<compile_context>
chip_gen: v5e
topology: v5e:2x2
jax: 0.10.0
libtpu: 0.0.40
codegen_flags: <defaults>
</compile_context>

<pallas_src>
import functools

import numpy as np
import jax
import jax.numpy as jnp
from jax.experimental import pallas as pl
from jax.experimental.pallas import tpu as pltpu

# ---- Shapes implied by the module (fc1 expects 64*3 -> input length 21) ----
L_IN, C_IN = 21, 3
C1, C2 = 32, 64
L1 = L_IN - 2          # 19 after conv1 (k=3, valid)
P1 = L1 // 2           # 9  after pool1 (floor mode)
L2 = P1 - 2            # 7  after conv2
P2 = L2 // 2           # 3  after pool2
H, NCLS = 128, 28

F_IN = 64              # flattened input 3*21=63 padded to 64; col 63 carries 1.0
S1 = 12                # conv1-out per-channel stride (10 slots needed; 12 keeps DP1%128==0)
D1 = 2 * C1 * S1       # 768: conv1 dense out, col = (l%2)*384 + c*12 + l//2
DP1 = D1 // 2          # 384: pooled1 col = c*12 + i (i=0..8 valid; col 383 carries 1.0)
S2 = 4
D2 = 2 * C2 * S2       # 512: conv2 dense out, col = (j%2)*256 + c*4 + j//2
DP2 = D2 // 2          # 256: pooled2 col = c*4 + m (m=0..2 valid)
NOUT = 128             # classes padded to 128 lanes (unmasked lane-dense stores)

BIAS_COL_IN = F_IN - 1   # x column that is 1.0 -> conv1 bias row of W1
BIAS_COL_P1 = DP1 - 1    # p1 column that is 1.0 -> conv2 bias row of W2

MAX_TB = 1024            # max batch rows per grid step


def asl_kernel(x_ref, w1_ref, w2_ref, wf1_ref, bf1_ref, wf2_ref, bf2_ref, o_ref):
    bf16 = jnp.bfloat16
    x = x_ref[...]                                                    # (TB, 64) bf16

    # conv1 (+bias folded via the constant-1.0 input column) as one dense matmul
    h1 = jnp.dot(x, w1_ref[...], preferred_element_type=jnp.float32)  # (TB, 768) f32
    # MaxPool1d(2): even/odd positions live in the two halves -> one VPU max;
    # ReLU after the pool (relu(max(a,b)) == max(relu(a),relu(b))).
    p1 = jnp.maximum(jnp.maximum(h1[:, :DP1], h1[:, DP1:]), 0.0)      # (TB, 384) f32

    # conv2 (+bias folded via p1's constant-1.0 column)
    h2 = jnp.dot(p1.astype(bf16), w2_ref[...],
                 preferred_element_type=jnp.float32)                  # (TB, 512) f32
    p2 = jnp.maximum(jnp.maximum(h2[:, :DP2], h2[:, DP2:]), 0.0)      # (TB, 256) f32

    # fc1 + ReLU (dropout(0.5) is identity at inference)
    h3 = jnp.dot(p2.astype(bf16), wf1_ref[...],
                 preferred_element_type=jnp.float32)                  # (TB, 128) f32
    h3 = jnp.maximum(h3 + bf1_ref[...], 0.0)

    # fc2, padded to 128 lanes (lane-dense unmasked stores)
    o_ref[...] = (jnp.dot(h3.astype(bf16), wf2_ref[...],
                          preferred_element_type=jnp.float32) + bf2_ref[...])


def pack_params(params):
    """One-time host-side repack of PyTorch-layout weights into dense bf16 matrices."""
    f = lambda a: np.asarray(a, dtype=np.float32)
    w1, b1 = f(params['conv1_w']), f(params['conv1_b'])        # (32,3,3), (32,)
    w2, b2 = f(params['conv2_w']), f(params['conv2_b'])        # (64,32,3), (64,)
    wf1, bf1 = f(params['fc1_w']), f(params['fc1_b'])          # (128,192), (128,)
    wf2, bf2 = f(params['fc2_w']), f(params['fc2_b'])          # (28,128), (28,)

    # conv1 dense: rows = c_in*21 + (l+k), cols = (l%2)*384 + c_out*12 + l//2
    W1 = np.zeros((F_IN, D1), np.float32)
    co, ci, k, l = np.meshgrid(np.arange(C1), np.arange(C_IN), np.arange(3),
                               np.arange(L1), indexing='ij')
    rows = ci * L_IN + l + k
    cols = (l % 2) * DP1 + co * S1 + l // 2
    np.add.at(W1, (rows.ravel(), cols.ravel()), w1[co, ci, k].ravel())
    # conv1 bias -> the constant-1.0 input column (row 63)
    co_b, l_b = np.meshgrid(np.arange(C1), np.arange(L1), indexing='ij')
    bcols = (l_b % 2) * DP1 + co_b * S1 + l_b // 2
    np.add.at(W1, (np.full(bcols.size, BIAS_COL_IN), bcols.ravel()),
              np.broadcast_to(b1[:, None], (C1, L1)).ravel())
    W1[BIAS_COL_IN, BIAS_COL_P1] = 1.0   # forward 1.0 into p1 col 383 (conv2 bias carrier)

    # conv2 dense: rows = c_in*12 + (j+k), cols = (j%2)*256 + c_out*4 + j//2
    W2 = np.zeros((DP1, D2), np.float32)
    co, ci, k, j = np.meshgrid(np.arange(C2), np.arange(C1), np.arange(3),
                               np.arange(L2), indexing='ij')
    rows = ci * S1 + j + k
    cols = (j % 2) * DP2 + co * S2 + j // 2
    np.add.at(W2, (rows.ravel(), cols.ravel()), w2[co, ci, k].ravel())
    # conv2 bias -> p1's constant-1.0 column (row 383)
    co_b, j_b = np.meshgrid(np.arange(C2), np.arange(L2), indexing='ij')
    bcols = (j_b % 2) * DP2 + co_b * S2 + j_b // 2
    np.add.at(W2, (np.full(bcols.size, BIAS_COL_P1), bcols.ravel()),
              np.broadcast_to(b2[:, None], (C2, L2)).ravel())

    # fc1: torch flatten index c*3+m -> pooled col c*4+m (m=3 rows stay zero,
    # absorbing the dropped pool position)
    Wf1 = wf1.reshape(H, C2, P2).transpose(1, 2, 0)               # (64, 3, 128)
    Wf1 = np.concatenate([Wf1, np.zeros((C2, 1, H), np.float32)], axis=1)
    Wf1 = Wf1.reshape(DP2, H)                                     # (256, 128)

    # fc2: pad classes 28 -> 128 lanes
    Wf2 = np.zeros((H, NOUT), np.float32); Wf2[:, :NCLS] = wf2.T
    Bf2 = np.zeros((1, NOUT), np.float32); Bf2[0, :NCLS] = bf2

    bf = jnp.bfloat16
    return (jnp.asarray(W1, bf), jnp.asarray(W2, bf), jnp.asarray(Wf1, bf),
            jnp.asarray(bf1.reshape(1, H), jnp.float32),
            jnp.asarray(Wf2, bf), jnp.asarray(Bf2, jnp.float32))


def _choose_tile(batch):
    """Batch tile: big (amortize per-step overhead) but keep >= 2 grid steps (v7x 2 TCs)."""
    tb = min(MAX_TB, max(1, -(-batch // 2)))
    tb = ((tb + 7) // 8) * 8                 # sublane multiple
    steps = max(2, -(-batch // tb))
    return tb, steps


def asl_forward(x_ncw, packed):
    """x_ncw: (B, 3, 21) PyTorch NCW layout.  Returns (B, 28) float32 logits."""
    W1, W2, Wf1, Bf1, Wf2, Bf2 = packed
    B = x_ncw.shape[0]
    tb, steps = _choose_tile(B)
    b_pad = tb * steps

    # Flatten per sample (channel-outer = torch memory order), pad 63 -> 64 and
    # batch -> b_pad; column 63 carries 1.0 so conv1's bias rides the matmul.
    x_flat = x_ncw.astype(jnp.float32).reshape(B, C_IN * L_IN)
    x_flat = jnp.pad(x_flat, ((0, b_pad - B), (0, F_IN - C_IN * L_IN)))
    x_flat = x_flat.at[:, BIAS_COL_IN].set(1.0).astype(jnp.bfloat16)

    def const_spec(shape):
        return pl.BlockSpec(shape, lambda i: (0,) * len(shape))

    flops = 2 * b_pad * (F_IN * D1 + DP1 * D2 + DP2 * H + H * NOUT)
    bytes_accessed = (b_pad * (F_IN * 2 + NOUT * 4)
                      + 2 * (F_IN * D1 + DP1 * D2 + DP2 * H + H * NOUT)
                      + 4 * (H + NOUT))

    out = pl.pallas_call(
        asl_kernel,
        out_shape=jax.ShapeDtypeStruct((b_pad, NOUT), jnp.float32),
        grid=(steps,),
        in_specs=[
            pl.BlockSpec((tb, F_IN), lambda i: (i, 0)),
            const_spec((F_IN, D1)),
            const_spec((DP1, D2)),
            const_spec((DP2, H)),
            const_spec((1, H)),
            const_spec((H, NOUT)),
            const_spec((1, NOUT)),
        ],
        out_specs=pl.BlockSpec((tb, NOUT), lambda i: (i, 0)),
        compiler_params=pltpu.CompilerParams(
            dimension_semantics=("parallel",),
            vmem_limit_bytes=32 * 1024 * 1024),
        cost_estimate=pl.CostEstimate(flops=flops, transcendentals=0,
                                      bytes_accessed=bytes_accessed),
    )(x_flat, W1, W2, Wf1, Bf1, Wf2, Bf2)

    return out[:B, :NCLS]


def make_asl_forward(params):
    """Pack weights ONCE (host-side numpy) and return a jitted forward closure."""
    packed = pack_params(params)
    return jax.jit(functools.partial(asl_forward, packed=packed))


def ref_forward(x, p):
    """Pure-JAX f32 reference matching the PyTorch forward (NCW layout)."""
    dn = ('NCH', 'OIH', 'NCH')
    hi = jax.lax.Precision.HIGHEST
    y = jax.lax.conv_general_dilated(x, p['conv1_w'], (1,), 'VALID',
                                     dimension_numbers=dn, precision=hi)
    y = jax.nn.relu(y + p['conv1_b'][None, :, None])
    y = jax.lax.reduce_window(y, -jnp.inf, jax.lax.max,
                              (1, 1, 2), (1, 1, 2), 'VALID')
    y = jax.lax.conv_general_dilated(y, p['conv2_w'], (1,), 'VALID',
                                     dimension_numbers=dn, precision=hi)
    y = jax.nn.relu(y + p['conv2_b'][None, :, None])
    y = jax.lax.reduce_window(y, -jnp.inf, jax.lax.max,
                              (1, 1, 2), (1, 1, 2), 'VALID')
    y = y.reshape(y.shape[0], -1)   # torch .view: channel-outer, length-inner
    y = jax.nn.relu(jnp.dot(y, p['fc1_w'].T, precision=hi) + p['fc1_b'])
    return jnp.dot(y, p['fc2_w'].T, precision=hi) + p['fc2_b']


if __name__ == "__main__":
    key = jax.random.PRNGKey(0)
    ks = jax.random.split(key, 9)
    B = 2
    # Deterministic synthetic parameters (shapes from the module __init__).
    params = {
        'conv1_w': 0.1 * jax.random.normal(ks[0], (C1, C_IN, 3), jnp.float32),
        'conv1_b': 0.1 * jax.random.normal(ks[1], (C1,), jnp.float32),
        'conv2_w': 0.1 * jax.random.normal(ks[2], (C2, C1, 3), jnp.float32),
        'conv2_b': 0.1 * jax.random.normal(ks[3], (C2,), jnp.float32),
        'fc1_w':   0.1 * jax.random.normal(ks[4], (H, C2 * P2), jnp.float32),
        'fc1_b':   0.1 * jax.random.normal(ks[5], (H,), jnp.float32),
        'fc2_w':   0.1 * jax.random.normal(ks[6], (NCLS, H), jnp.float32),
        'fc2_b':   0.1 * jax.random.normal(ks[7], (NCLS,), jnp.float32),
    }
    x = jax.random.normal(ks[8], (B, C_IN, L_IN), jnp.float32)  # NCW like torch

    fwd = make_asl_forward(params)           # weights packed once, forward jitted
    out = jax.block_until_ready(fwd(x))

    ref = jax.block_until_ready(ref_forward(x, params))
    assert out.shape == (B, NCLS), out.shape
    # bf16 MXU path vs f32 reference: tolerance covers bf16 rounding only.
    assert jnp.allclose(out, ref, atol=2e-2, rtol=2e-2), \
        f"max abs diff {jnp.max(jnp.abs(out - ref))}"
    print("KERNEL_OK")
</pallas_src>

<mosaic_0001>
module attributes {stable_mosaic.version = 11 : i64} {
  func.func @asl_kernel(%arg0: i32, %arg1: memref<8x64xbf16, #tpu.memory_space<vmem>>, %arg2: memref<64x768xbf16, #tpu.memory_space<vmem>>, %arg3: memref<384x512xbf16, #tpu.memory_space<vmem>>, %arg4: memref<256x128xbf16, #tpu.memory_space<vmem>>, %arg5: memref<1x128xf32, #tpu.memory_space<vmem>>, %arg6: memref<128x128xbf16, #tpu.memory_space<vmem>>, %arg7: memref<1x128xf32, #tpu.memory_space<vmem>>, %arg8: memref<8x128xf32, #tpu.memory_space<vmem>>) attributes {dimension_semantics = [#tpu.dimension_semantics<parallel>], iteration_bounds = array<i64: 2>, scalar_prefetch = 0 : i64, scratch_operands = 0 : i64, tpu.core_type = #tpu.core_type<tc>, window_params = [{transform_indices = @transform_0, window_bounds = array<i64: 8, 64>}, {pipeline_mode = #tpu.pipeline_mode<synchronous>, transform_indices = @transform_1, window_bounds = array<i64: 64, 768>}, {pipeline_mode = #tpu.pipeline_mode<synchronous>, transform_indices = @transform_2, window_bounds = array<i64: 384, 512>}, {pipeline_mode = #tpu.pipeline_mode<synchronous>, transform_indices = @transform_3, window_bounds = array<i64: 256, 128>}, {pipeline_mode = #tpu.pipeline_mode<synchronous>, transform_indices = @transform_4, window_bounds = array<i64: 1, 128>}, {pipeline_mode = #tpu.pipeline_mode<synchronous>, transform_indices = @transform_5, window_bounds = array<i64: 128, 128>}, {pipeline_mode = #tpu.pipeline_mode<synchronous>, transform_indices = @transform_6, window_bounds = array<i64: 1, 128>}, {transform_indices = @transform_7, window_bounds = array<i64: 8, 128>}]} {
    %c0 = arith.constant 0 : index
    %c0_0 = arith.constant 0 : index
    %0 = vector.load %arg1[%c0, %c0_0] : memref<8x64xbf16, #tpu.memory_space<vmem>>, vector<8x64xbf16>
    %c0_1 = arith.constant 0 : index
    %c0_2 = arith.constant 0 : index
    %1 = vector.load %arg2[%c0_1, %c0_2] : memref<64x768xbf16, #tpu.memory_space<vmem>>, vector<64x768xbf16>
    %cst = arith.constant dense<0.000000e+00> : vector<8x768xf32>
    %2 = tpu.matmul %0, %1, %cst {dimension_numbers = #tpu.dot_dimension_numbers<[1], [0], [0], [1], [0, 0, 1, 1], [], []>} : vector<8x64xbf16>, vector<64x768xbf16>, vector<8x768xf32> -> vector<8x768xf32>
    %3 = vector.extract_strided_slice %2 {offsets = [0, 0], sizes = [8, 384], strides = [1, 1]} : vector<8x768xf32> to vector<8x384xf32>
    %4 = vector.extract_strided_slice %2 {offsets = [0, 384], sizes = [8, 384], strides = [1, 1]} : vector<8x768xf32> to vector<8x384xf32>
    %5 = arith.maximumf %3, %4 : vector<8x384xf32>
    %cst_3 = arith.constant 0.000000e+00 : f32
    %6 = vector.broadcast %cst_3 : f32 to vector<8x384xf32>
    %7 = arith.maximumf %5, %6 : vector<8x384xf32>
    %8 = arith.truncf %7 : vector<8x384xf32> to vector<8x384xbf16>
    %c0_4 = arith.constant 0 : index
    %c0_5 = arith.constant 0 : index
    %9 = vector.load %arg3[%c0_4, %c0_5] : memref<384x512xbf16, #tpu.memory_space<vmem>>, vector<384x512xbf16>
    %cst_6 = arith.constant dense<0.000000e+00> : vector<8x512xf32>
    %10 = tpu.matmul %8, %9, %cst_6 {dimension_numbers = #tpu.dot_dimension_numbers<[1], [0], [0], [1], [0, 0, 1, 1], [], []>} : vector<8x384xbf16>, vector<384x512xbf16>, vector<8x512xf32> -> vector<8x512xf32>
    %11 = vector.extract_strided_slice %10 {offsets = [0, 0], sizes = [8, 256], strides = [1, 1]} : vector<8x512xf32> to vector<8x256xf32>
    %12 = vector.extract_strided_slice %10 {offsets = [0, 256], sizes = [8, 256], strides = [1, 1]} : vector<8x512xf32> to vector<8x256xf32>
    %13 = arith.maximumf %11, %12 : vector<8x256xf32>
    %cst_7 = arith.constant 0.000000e+00 : f32
    %14 = vector.broadcast %cst_7 : f32 to vector<8x256xf32>
    %15 = arith.maximumf %13, %14 : vector<8x256xf32>
    %16 = arith.truncf %15 : vector<8x256xf32> to vector<8x256xbf16>
    %c0_8 = arith.constant 0 : index
    %c0_9 = arith.constant 0 : index
    %17 = vector.load %arg4[%c0_8, %c0_9] : memref<256x128xbf16, #tpu.memory_space<vmem>>, vector<256x128xbf16>
    %cst_10 = arith.constant dense<0.000000e+00> : vector<8x128xf32>
    %18 = tpu.matmul %16, %17, %cst_10 {dimension_numbers = #tpu.dot_dimension_numbers<[1], [0], [0], [1], [0, 0, 1, 1], [], []>} : vector<8x256xbf16>, vector<256x128xbf16>, vector<8x128xf32> -> vector<8x128xf32>
    %c0_11 = arith.constant 0 : index
    %c0_12 = arith.constant 0 : index
    %19 = vector.load %arg5[%c0_11, %c0_12] : memref<1x128xf32, #tpu.memory_space<vmem>>, vector<1x128xf32>
    %20 = vector.broadcast %19 : vector<1x128xf32> to vector<8x128xf32>
    %21 = arith.addf %18, %20 : vector<8x128xf32>
    %cst_13 = arith.constant 0.000000e+00 : f32
    %22 = vector.broadcast %cst_13 : f32 to vector<8x128xf32>
    %23 = arith.maximumf %21, %22 : vector<8x128xf32>
    %24 = arith.truncf %23 : vector<8x128xf32> to vector<8x128xbf16>
    %c0_14 = arith.constant 0 : index
    %c0_15 = arith.constant 0 : index
    %25 = vector.load %arg6[%c0_14, %c0_15] : memref<128x128xbf16, #tpu.memory_space<vmem>>, vector<128x128xbf16>
    %cst_16 = arith.constant dense<0.000000e+00> : vector<8x128xf32>
    %26 = tpu.matmul %24, %25, %cst_16 {dimension_numbers = #tpu.dot_dimension_numbers<[1], [0], [0], [1], [0, 0, 1, 1], [], []>} : vector<8x128xbf16>, vector<128x128xbf16>, vector<8x128xf32> -> vector<8x128xf32>
    %c0_17 = arith.constant 0 : index
    %c0_18 = arith.constant 0 : index
    %27 = vector.load %arg7[%c0_17, %c0_18] : memref<1x128xf32, #tpu.memory_space<vmem>>, vector<1x128xf32>
    %28 = vector.broadcast %27 : vector<1x128xf32> to vector<8x128xf32>
    %29 = arith.addf %26, %28 : vector<8x128xf32>
    %c0_19 = arith.constant 0 : index
    %c0_20 = arith.constant 0 : index
    %30 = vector.load %arg8[%c0_19, %c0_20] : memref<8x128xf32, #tpu.memory_space<vmem>>, vector<8x128xf32>
    tpu.vector_store %arg8[%c0_19, %c0_20], %29 {strides = array<i32>} : memref<8x128xf32, #tpu.memory_space<vmem>>, vector<8x128xf32>,
    return
  }
  func.func @transform_0(%arg0: i32) -> (i32, i32) {
    %c0_i32 = arith.constant 0 : i32
    %c0_i32_0 = arith.constant 0 : i32
    return %arg0, %c0_i32 : i32, i32
  }
  func.func @transform_1(%arg0: i32) -> (i32, i32) {
    %c0_i32 = arith.constant 0 : i32
    %c0_i32_0 = arith.constant 0 : i32
    %c0_i32_1 = arith.constant 0 : i32
    return %c0_i32, %c0_i32_0 : i32, i32
  }
  func.func @transform_2(%arg0: i32) -> (i32, i32) {
    %c0_i32 = arith.constant 0 : i32
    %c0_i32_0 = arith.constant 0 : i32
    %c0_i32_1 = arith.constant 0 : i32
    return %c0_i32, %c0_i32_0 : i32, i32
  }
  func.func @transform_3(%arg0: i32) -> (i32, i32) {
    %c0_i32 = arith.constant 0 : i32
    %c0_i32_0 = arith.constant 0 : i32
    %c0_i32_1 = arith.constant 0 : i32
    return %c0_i32, %c0_i32_0 : i32, i32
  }
  func.func @transform_4(%arg0: i32) -> (i32, i32) {
    %c0_i32 = arith.constant 0 : i32
    %c0_i32_0 = arith.constant 0 : i32
    %c0_i32_1 = arith.constant 0 : i32
    return %c0_i32, %c0_i32_0 : i32, i32
  }
  func.func @transform_5(%arg0: i32) -> (i32, i32) {
    %c0_i32 = arith.constant 0 : i32
    %c0_i32_0 = arith.constant 0 : i32
    %c0_i32_1 = arith.constant 0 : i32
    return %c0_i32, %c0_i32_0 : i32, i32
  }
  func.func @transform_6(%arg0: i32) -> (i32, i32) {
    %c0_i32 = arith.constant 0 : i32
    %c0_i32_0 = arith.constant 0 : i32
    %c0_i32_1 = arith.constant 0 : i32
    return %c0_i32, %c0_i32_0 : i32, i32
  }
  func.func @transform_7(%arg0: i32) -> (i32, i32) {
    %c0_i32 = arith.constant 0 : i32
    %c0_i32_0 = arith.constant 0 : i32
    return %arg0, %c0_i32 : i32, i32
  }
}

</mosaic_0001>

<llo_original>
// kernel: asl_forward.1
$region0: #{asl_forward.1}
  #allocation0 [shape = 'u32[]', space=smem, size = 0x4, offset = 0x4, fixed_abs, tag = 'smem constant byte address 0x4 - core index']
  #allocation1 [shape = 'u32[72,128]{1,0:T(1,128)}', space=vmem, size = 0x9000, scoped, tag = 'internal scratch']
  %s0 = inlined_call_operand.vmem [shape: bf16[16,64], index: 0, kind: input, shape index: {}]
  %s1 = inlined_call_operand.hbm [shape: bf16[64,768], index: 1, kind: input, shape index: {}]
  %s2 = inlined_call_operand.hbm [shape: bf16[384,512], index: 2, kind: input, shape index: {}]
  %s3 = inlined_call_operand.hbm [shape: bf16[256,128], index: 3, kind: input, shape index: {}]
  %s4 = inlined_call_operand.vmem [shape: f32[1,128], index: 4, kind: input, shape index: {}]
  %s5 = inlined_call_operand.hbm [shape: bf16[128,128], index: 5, kind: input, shape index: {}]
  %s6 = inlined_call_operand.vmem [shape: f32[1,128], index: 6, kind: input, shape index: {}]
  %s7 = inlined_call_operand.vmem [shape: f32[16,128], index: 7, kind: output, shape index: {}]
  %s8 = sld [smem:[#allocation0]]
  $region77: #{asl_forward.1} parent=0
    _
  %s10 = ssub.s32 1, %s8
  %s11 = scalar_select 0, %s10, %s8
  $region1: #{asl_forward.1} parent=0
    #allocation2 [shape = 'u8[98304]{0}', space=vmem, size = 0x18000, scoped, tag = 'input window, operand 1, single buffered']
    #allocation3 [shape = 's32[2]{0}', space=sflag, size = 0x8, scoped, tag = 'scoped memory for asl_forward.1']
    #allocation4 [shape = 'u8[393216]{0}', space=vmem, size = 0x60000, scoped, tag = 'input window, operand 2, single buffered']
    #allocation5 [shape = 's32[1]{0}', space=sflag, size = 0x4, scoped, tag = 'scoped memory for asl_forward.1']
    #allocation6 [shape = 'u8[65536]{0}', space=vmem, size = 0x10000, scoped, tag = 'input window, operand 3, single buffered']
    #allocation7 [shape = 'u8[32768]{0}', space=vmem, size = 0x8000, scoped, tag = 'input window, operand 5, single buffered']
    #allocation8 [shape = 's32[1]{0}', space=sflag, size = 0x4, scoped, tag = 'scoped memory for asl_forward.1']
    %12 = vsyncpa [#allocation3], 0
    %13 = vsyncpa [#allocation5], 0
    %14 = vsyncpa [#allocation8], 0
    loop: start=0, step=1, limit=4
    $region2: #{asl_forward.1} parent=1 // loop_pre_header
      _
    $region3: #{asl_forward.1} parent=1 // loop_header
      %s16 = sphi 0, %s20
      %p17 = scmp.ge.s32.totalorder %s16, 4
      %s26 = sphi 0, %s28
      %s29 = sphi 0, %s26
      %s30 = sphi 0, %s29
      %s46 = sphi 0, %s30
      %s50 = sphi 0, %s50
      %s52 = sphi 0, %s50
      %s53 = sphi 0, %s52
      %s67 = sphi 0, %s53
      %s71 = sphi 0, %s71
      %s73 = sphi 0, %s71
      %s74 = sphi 0, %s73
      %s88 = sphi 0, %s74
      %s92 = sphi 0, %s92
      %s94 = sphi 0, %s92
      %s95 = sphi 0, %s94
      %s109 = sphi 0, %s95
      %s113 = sphi 0, %s113
      %s115 = sphi 0, %s113
      %s116 = sphi 0, %s115
      %s130 = sphi 0, %s116
      %s134 = sphi 0, %s134
      %s136 = sphi 0, %s134
      %s137 = sphi 0, %s136
      %s151 = sphi 0, %s137
      %s155 = sphi 0, %s155
      %s157 = sphi 0, %s155
      %s158 = sphi 0, %s157
      %s172 = sphi 0, %s158
      %s178 = sphi 0, %s180
      %s181 = sphi 0, %s178
      %s182 = sphi 0, %s181
      %s198 = sphi 0, %s182
    $region4: #{asl_forward.1} parent=1 // loop_header_branch
      %19 = sbr.rel (%p17) target = $region8
    $region5: #{asl_forward.1} parent=1 // loop_body
      %s21 = ssub.s32 %s16, 1
      %s22 = ssub.s32 %s16, 2
      %s23 = sadd.s32 %s16, 1
      %s24 = ssub.s32 %s16, %s23
      %p25 = scmp.eq.s32.totalorder %s24, 0
      %s27 = sadd.s32 %s26, 1
      %s28 = scalar_select %p25, %s26, %s27
      %p31 = pneg %p25
      %p32 = scmp.eq.s32.totalorder %s16, 1
      %p33 = por %p31, %p32
      %p34 = scmp.ne.s32.totalorder %s26, %s29
      %p35 = scmp.eq.s32.totalorder %s16, 0
      %p36 = por %p34, %p35
      %p37 = scmp.ne.s32.totalorder %s26, %s29
      %p38 = scmp.eq.s32.totalorder %s21, 1
      %p39 = por %p37, %p38
      %p40 = scmp.ne.s32.totalorder %s29, %s30
      %p41 = scmp.eq.s32.totalorder %s21, 0
      %p42 = por %p40, %p41
      %p43 = scmp.ne.s32.totalorder %s29, %s30
      %p44 = scmp.eq.s32.totalorder %s22, 1
      %p45 = por %p43, %p44
      %p47 = scmp.ne.s32.totalorder %s30, %s46
      %p48 = scmp.eq.s32.totalorder %s22, 0
      %p49 = por %p47, %p48
      %s51 = sadd.s32 %s50, 1
      %p54 = scmp.eq.s32.totalorder %s16, 1
      %p55 = scmp.ne.s32.totalorder %s50, %s52
      %p56 = scmp.eq.s32.totalorder %s16, 0
      %p57 = por %p55, %p56
      %p58 = scmp.ne.s32.totalorder %s50, %s52
      %p59 = scmp.eq.s32.totalorder %s21, 1
      %p60 = por %p58, %p59
      %p61 = scmp.ne.s32.totalorder %s52, %s53
      %p62 = scmp.eq.s32.totalorder %s21, 0
      %p63 = por %p61, %p62
      %p64 = scmp.ne.s32.totalorder %s52, %s53
      %p65 = scmp.eq.s32.totalorder %s22, 1
      %p66 = por %p64, %p65
      %p68 = scmp.ne.s32.totalorder %s53, %s67
      %p69 = scmp.eq.s32.totalorder %s22, 0
      %p70 = por %p68, %p69
      %s72 = sadd.s32 %s71, 1
      %p75 = scmp.eq.s32.totalorder %s16, 1
      %p76 = scmp.ne.s32.totalorder %s71, %s73
      %p77 = scmp.eq.s32.totalorder %s16, 0
      %p78 = por %p76, %p77
      %p79 = scmp.ne.s32.totalorder %s71, %s73
      %p80 = scmp.eq.s32.totalorder %s21, 1
      %p81 = por %p79, %p80
      %p82 = scmp.ne.s32.totalorder %s73, %s74
      %p83 = scmp.eq.s32.totalorder %s21, 0
      %p84 = por %p82, %p83
      %p85 = scmp.ne.s32.totalorder %s73, %s74
      %p86 = scmp.eq.s32.totalorder %s22, 1
      %p87 = por %p85, %p86
      %p89 = scmp.ne.s32.totalorder %s74, %s88
      %p90 = scmp.eq.s32.totalorder %s22, 0
      %p91 = por %p89, %p90
      %s93 = sadd.s32 %s92, 1
      %p96 = scmp.eq.s32.totalorder %s16, 1
      %p97 = scmp.ne.s32.totalorder %s92, %s94
      %p98 = scmp.eq.s32.totalorder %s16, 0
      %p99 = por %p97, %p98
      %p100 = scmp.ne.s32.totalorder %s92, %s94
      %p101 = scmp.eq.s32.totalorder %s21, 1
      %p102 = por %p100, %p101
      %p103 = scmp.ne.s32.totalorder %s94, %s95
      %p104 = scmp.eq.s32.totalorder %s21, 0
      %p105 = por %p103, %p104
      %p106 = scmp.ne.s32.totalorder %s94, %s95
      %p107 = scmp.eq.s32.totalorder %s22, 1
      %p108 = por %p106, %p107
      %p110 = scmp.ne.s32.totalorder %s95, %s109
      %p111 = scmp.eq.s32.totalorder %s22, 0
      %p112 = por %p110, %p111
      %s114 = sadd.s32 %s113, 1
      %p117 = scmp.eq.s32.totalorder %s16, 1
      %p118 = scmp.ne.s32.totalorder %s113, %s115
      %p119 = scmp.eq.s32.totalorder %s16, 0
      %p120 = por %p118, %p119
      %p121 = scmp.ne.s32.totalorder %s113, %s115
      %p122 = scmp.eq.s32.totalorder %s21, 1
      %p123 = por %p121, %p122
      %p124 = scmp.ne.s32.totalorder %s115, %s116
      %p125 = scmp.eq.s32.totalorder %s21, 0
      %p126 = por %p124, %p125
      %p127 = scmp.ne.s32.totalorder %s115, %s116
      %p128 = scmp.eq.s32.totalorder %s22, 1
      %p129 = por %p127, %p128
      %p131 = scmp.ne.s32.totalorder %s116, %s130
      %p132 = scmp.eq.s32.totalorder %s22, 0
      %p133 = por %p131, %p132
      %s135 = sadd.s32 %s134, 1
      %p138 = scmp.eq.s32.totalorder %s16, 1
      %p139 = scmp.ne.s32.totalorder %s134, %s136
      %p140 = scmp.eq.s32.totalorder %s16, 0
      %p141 = por %p139, %p140
      %p142 = scmp.ne.s32.totalorder %s134, %s136
      %p143 = scmp.eq.s32.totalorder %s21, 1
      %p144 = por %p142, %p143
      %p145 = scmp.ne.s32.totalorder %s136, %s137
      %p146 = scmp.eq.s32.totalorder %s21, 0
      %p147 = por %p145, %p146
      %p148 = scmp.ne.s32.totalorder %s136, %s137
      %p149 = scmp.eq.s32.totalorder %s22, 1
      %p150 = por %p148, %p149
      %p152 = scmp.ne.s32.totalorder %s137, %s151
      %p153 = scmp.eq.s32.totalorder %s22, 0
      %p154 = por %p152, %p153
      %s156 = sadd.s32 %s155, 1
      %p159 = scmp.eq.s32.totalorder %s16, 1
      %p160 = scmp.ne.s32.totalorder %s155, %s157
      %p161 = scmp.eq.s32.totalorder %s16, 0
      %p162 = por %p160, %p161
      %p163 = scmp.ne.s32.totalorder %s155, %s157
      %p164 = scmp.eq.s32.totalorder %s21, 1
      %p165 = por %p163, %p164
      %p166 = scmp.ne.s32.totalorder %s157, %s158
      %p167 = scmp.eq.s32.totalorder %s21, 0
      %p168 = por %p166, %p167
      %p169 = scmp.ne.s32.totalorder %s157, %s158
      %p170 = scmp.eq.s32.totalorder %s22, 1
      %p171 = por %p169, %p170
      %p173 = scmp.ne.s32.totalorder %s158, %s172
      %p174 = scmp.eq.s32.totalorder %s22, 0
      %p175 = por %p173, %p174
      %s176 = ssub.s32 %s16, %s23
      %p177 = scmp.eq.s32.totalorder %s176, 0
      %s179 = sadd.s32 %s178, 1
      %s180 = scalar_select %p177, %s178, %s179
      %p183 = pneg %p177
      %p184 = scmp.eq.s32.totalorder %s16, 1
      %p185 = por %p183, %p184
      %p186 = scmp.ne.s32.totalorder %s178, %s181
      %p187 = scmp.eq.s32.totalorder %s16, 0
      %p188 = por %p186, %p187
      %p189 = scmp.ne.s32.totalorder %s178, %s181
      %p190 = scmp.eq.s32.totalorder %s21, 1
      %p191 = por %p189, %p190
      %p192 = scmp.ne.s32.totalorder %s181, %s182
      %p193 = scmp.eq.s32.totalorder %s21, 0
      %p194 = por %p192, %p193
      %p195 = scmp.ne.s32.totalorder %s181, %s182
      %p196 = scmp.eq.s32.totalorder %s22, 1
      %p197 = por %p195, %p196
      %p199 = scmp.ne.s32.totalorder %s182, %s198
      %p200 = scmp.eq.s32.totalorder %s22, 0
      %p201 = por %p199, %p200
      %p202 = scmp.le.s32.totalorder 1, %s16
      %p203 = scmp.lt.s32.totalorder %s16, 3
      %p204 = pnand %p202, %p203
      %p205 = pneg %p204
      // Predicated region
      $region9: #{asl_forward.1} parent=5 // pred_check
        _
      $region10: #{asl_forward.1} parent=5 // pred_check_branch
        %207 = sbr.rel (%p204) target = $region12
      $region11: #{asl_forward.1} parent=5 // pred_region
        %s208 = ssub.s32 %s16, 1
        // Predicated region
        $region13: #{asl_forward.1} parent=11 // pred_check
          %p209 = pneg %p63
        $region14: #{asl_forward.1} parent=11 // pred_check_branch
          %211 = sbr.rel (%p209) target = $region16
        $region15: #{asl_forward.1} parent=11 // pred_region
          %213 = vsyncadd [#allocation3], 0
          %s214 = sshll.u32 %s1, 4
          %s215 = int_to_ptr.hbm [resolvable:$true] %s214
          %s216 = sshll.u32 [#allocation2], 4
          %s217 = int_to_ptr.vmem [resolvable:$true] %s216
          %222 = dma.hbm_to_vmem [thread:$0]  %s215, 3072, %s217, [#allocation3], 384, 384, 24
        $region16: #{asl_forward.1} parent=11 // pred_fallthru
          _
        // Predicated region
        $region17: #{asl_forward.1} parent=11 // pred_check
          %p223 = pneg %p84
        $region18: #{asl_forward.1} parent=11 // pred_check_branch
          %225 = sbr.rel (%p223) target = $region20
        $region19: #{asl_forward.1} parent=11 // pred_region
          %227 = vsyncadd [#allocation5], 0
          %s228 = sshll.u32 %s2, 4
          %s229 = int_to_ptr.hbm [resolvable:$true] %s228
          %s230 = sshll.u32 [#allocation4], 4
          %s231 = int_to_ptr.vmem [resolvable:$true] %s230
          %236 = dma.hbm_to_vmem [thread:$0]  %s229, 12288, %s231, [#allocation5], 256, 256, 16
        $region20: #{asl_forward.1} parent=11 // pred_fallthru
          _
        // Predicated region
        $region21: #{asl_forward.1} parent=11 // pred_check
          %p237 = pneg %p105
        $region22: #{asl_forward.1} parent=11 // pred_check_branch
          %239 = sbr.rel (%p237) target = $region24
        $region23: #{asl_forward.1} parent=11 // pred_region
          %241 = vsyncadd [#allocation5], 0
          %s242 = sshll.u32 %s3, 4
          %s243 = int_to_ptr.hbm [resolvable:$true] %s242
          %s244 = sshll.u32 [#allocation6], 4
          %s245 = int_to_ptr.vmem [resolvable:$true] %s244
          %250 = dma.hbm_to_vmem [thread:$0]  %s243, 2048, %s245, [#allocation5], 64, 64, 4
        $region24: #{asl_forward.1} parent=11 // pred_fallthru
          _
        // Predicated region
        $region25: #{asl_forward.1} parent=11 // pred_check
          %p251 = pneg %p126
        $region26: #{asl_forward.1} parent=11 // pred_check_branch
          %253 = sbr.rel (%p251) target = $region28
        $region27: #{asl_forward.1} parent=11 // pred_region
          _
        $region28: #{asl_forward.1} parent=11 // pred_fallthru
          _
        // Predicated region
        $region29: #{asl_forward.1} parent=11 // pred_check
          %p254 = pneg %p147
        $region30: #{asl_forward.1} parent=11 // pred_check_branch
          %256 = sbr.rel (%p254) target = $region32
        $region31: #{asl_forward.1} parent=11 // pred_region
          %258 = vsyncadd [#allocation8], 0
          %s259 = sshll.u32 %s5, 4
          %s260 = int_to_ptr.hbm [resolvable:$true] %s259
          %s261 = sshll.u32 [#allocation7], 4
          %s262 = int_to_ptr.vmem [resolvable:$true] %s261
          %267 = dma.hbm_to_vmem [thread:$0]  %s260, 1024, %s262, [#allocation8], 64, 64, 4
        $region32: #{asl_forward.1} parent=11 // pred_fallthru
          _
        // Predicated region
        $region33: #{asl_forward.1} parent=11 // pred_check
          %p268 = pneg %p168
        $region34: #{asl_forward.1} parent=11 // pred_check_branch
          %270 = sbr.rel (%p268) target = $region36
        $region35: #{asl_forward.1} parent=11 // pred_region
          _
        $region36: #{asl_forward.1} parent=11 // pred_fallthru
          _
      $region12: #{asl_forward.1} parent=5 // pred_fallthru
        _
      %p271 = scmp.lt.s32.totalorder %s16, 2
      // Predicated region
      $region37: #{asl_forward.1} parent=5 // pred_check
        %p272 = pneg %p271
      $region38: #{asl_forward.1} parent=5 // pred_check_branch
        %274 = sbr.rel (%p272) target = $region40
      $region39: #{asl_forward.1} parent=5 // pred_region
        // Predicated region
        $region41: #{asl_forward.1} parent=39 // pred_check
          %p275 = pneg %p36
        $region42: #{asl_forward.1} parent=39 // pred_check_branch
          %277 = sbr.rel (%p275) target = $region44
        $region43: #{asl_forward.1} parent=39 // pred_region
          %p278 = scmp.lt.s32.totalorder %s16, 1
          %s279 = scalar_select %p278, %s16, 1
          %s280 = smul.addr %s279, 4
          %s281 = scalar_lea.vmem %s0, %s280
        $region44: #{asl_forward.1} parent=39 // pred_fallthru
          _
      $region40: #{asl_forward.1} parent=5 // pred_fallthru
        _
      %p282 = scmp.le.s32.totalorder 1, %s16
      %p283 = scmp.lt.s32.totalorder %s16, 3
      %p284 = pnand %p282, %p283
      %p285 = pneg %p284
      // Predicated region
      $region45: #{asl_forward.1} parent=5 // pred_check
        _
      $region46: #{asl_forward.1} parent=5 // pred_check_branch
        %287 = sbr.rel (%p284) target = $region48
      $region47: #{asl_forward.1} parent=5 // pred_region
        %s288 = ssub.s32 %s16, 1
        // Predicated region
        $region49: #{asl_forward.1} parent=47 // pred_check
          %p289 = pneg %p63
        $region50: #{asl_forward.1} parent=47 // pred_check_branch
          %291 = sbr.rel (%p289) target = $region52
        $region51: #{asl_forward.1} parent=47 // pred_region
          %293 = dma.done [#allocation3], 3072
        $region52: #{asl_forward.1} parent=47 // pred_fallthru
          _
        // Predicated region
        $region53: #{asl_forward.1} parent=47 // pred_check
          %p294 = pneg %p84
        $region54: #{asl_forward.1} parent=47 // pred_check_branch
          %296 = sbr.rel (%p294) target = $region56
        $region55: #{asl_forward.1} parent=47 // pred_region
          %298 = dma.done [#allocation5], 12288
        $region56: #{asl_forward.1} parent=47 // pred_fallthru
          _
        // Predicated region
        $region57: #{asl_forward.1} parent=47 // pred_check
          %p299 = pneg %p105
        $region58: #{asl_forward.1} parent=47 // pred_check_branch
          %301 = sbr.rel (%p299) target = $region60
        $region59: #{asl_forward.1} parent=47 // pred_region
          %303 = dma.done [#allocation5], 2048
        $region60: #{asl_forward.1} parent=47 // pred_fallthru
          _
        // Predicated region
        $region61: #{asl_forward.1} parent=47 // pred_check
          %p304 = pneg %p147
        $region62: #{asl_forward.1} parent=47 // pred_check_branch
          %306 = sbr.rel (%p304) target = $region64
        $region63: #{asl_forward.1} parent=47 // pred_region
          %308 = dma.done [#allocation8], 1024
        $region64: #{asl_forward.1} parent=47 // pred_fallthru
          _
        %p309 = scmp.lt.s32.totalorder %s21, 1
        %s310 = scalar_select %p309, %s21, 1
        %s311 = smul.addr %s310, 4
        %s312 = scalar_lea.vmem %s0, %s311
        %p313 = pneg %p42
        %p314 = pneg %p39
        %p315 = pneg %p63
        %p316 = pneg %p60
        %p317 = pneg %p84
        %p318 = pneg %p81
        %p319 = pneg %p105
        %p320 = pneg %p102
        %p321 = pneg %p126
        %p322 = pneg %p123
        %p323 = pneg %p147
        %p324 = pneg %p144
        %p325 = pneg %p168
        %p326 = pneg %p165
        %p327 = pneg %p194
        %p328 = pneg %p191
        %p329 = scmp.lt.s32.totalorder %s21, 1
        %s330 = scalar_select %p329, %s21, 1
        %s331 = smul.addr %s330, 8
        %s332 = scalar_lea.vmem %s7, %s331
        %p333 = scmp.lt.s32.totalorder %s21, 1
        %s334 = scalar_select %p333, %s21, 1
        %s335 = smul.addr %s334, 4
        %s336 = scalar_lea.vmem %s0, %s335
        %p337 = scmp.lt.s32.totalorder %s21, 1
        %s338 = scalar_select %p337, %s21, 1
        %s339 = smul.addr %s338, 8
        %s340 = scalar_lea.vmem %s7, %s339
        %v342 = vld [vmem:[%s336] sm:$0xf]
        %v343 = vld [vmem:[#allocation2] sm:$0xff]
        %v344 = vld [vmem:[#allocation2 + $0x8] sm:$0xff]
        %v345 = vld [vmem:[#allocation2 + $0x10] sm:$0xff]
        %v346 = vld [vmem:[#allocation2 + $0x18] sm:$0xff]
        %v347 = vld [vmem:[#allocation2 + $0x20] sm:$0xff]
        %v348 = vld [vmem:[#allocation2 + $0x28] sm:$0xff]
        %v349 = vld [vmem:[#allocation2 + $0x30] sm:$0xff]
        %v350 = vld [vmem:[#allocation2 + $0x38] sm:$0xff]
        %v351 = vld [vmem:[#allocation2 + $0x40] sm:$0xff]
        %v352 = vld [vmem:[#allocation2 + $0x48] sm:$0xff]
        %v353 = vld [vmem:[#allocation2 + $0x50] sm:$0xff]
        %v354 = vld [vmem:[#allocation2 + $0x58] sm:$0xff]
        %v355 = vld [vmem:[#allocation2 + $0x60] sm:$0xff]
        %v356 = vld [vmem:[#allocation2 + $0x68] sm:$0xff]
        %v357 = vld [vmem:[#allocation2 + $0x70] sm:$0xff]
        %v358 = vld [vmem:[#allocation2 + $0x78] sm:$0xff]
        %v359 = vld [vmem:[#allocation2 + $0x80] sm:$0xff]
        %v360 = vld [vmem:[#allocation2 + $0x88] sm:$0xff]
        %v361 = vld [vmem:[#allocation2 + $0x90] sm:$0xff]
        %v362 = vld [vmem:[#allocation2 + $0x98] sm:$0xff]
        %v363 = vld [vmem:[#allocation2 + $0xa0] sm:$0xff]
        %v364 = vld [vmem:[#allocation2 + $0xa8] sm:$0xff]
        %v365 = vld [vmem:[#allocation2 + $0xb0] sm:$0xff]
        %v366 = vld [vmem:[#allocation2 + $0xb8] sm:$0xff]
        %v391 = vunpack.c.l.b16 %v343
        %v392 = vunpack.c.h.b16 %v343
        %v393 = vunpack.c.l.b16 %v344
        %v394 = vunpack.c.h.b16 %v344
        %v395 = vunpack.c.l.b16 %v345
        %v396 = vunpack.c.h.b16 %v345
        %v397 = vunpack.c.l.b16 %v346
        %v398 = vunpack.c.h.b16 %v346
        %v399 = vunpack.c.l.b16 %v347
        %v400 = vunpack.c.h.b16 %v347
        %v401 = vunpack.c.l.b16 %v348
        %v402 = vunpack.c.h.b16 %v348
        %v403 = vunpack.c.l.b16 %v349
        %v404 = vunpack.c.h.b16 %v349
        %v405 = vunpack.c.l.b16 %v350
        %v406 = vunpack.c.h.b16 %v350
        %v407 = vunpack.c.l.b16 %v351
        %v408 = vunpack.c.h.b16 %v351
        %v409 = vunpack.c.l.b16 %v352
        %v410 = vunpack.c.h.b16 %v352
        %v411 = vunpack.c.l.b16 %v353
        %v412 = vunpack.c.h.b16 %v353
        %v413 = vunpack.c.l.b16 %v354
        %v414 = vunpack.c.h.b16 %v354
        %v415 = vunpack.c.l.b16 %v355
        %v416 = vunpack.c.h.b16 %v355
        %v417 = vunpack.c.l.b16 %v356
        %v418 = vunpack.c.h.b16 %v356
        %v419 = vunpack.c.l.b16 %v357
        %v420 = vunpack.c.h.b16 %v357
        %v421 = vunpack.c.l.b16 %v358
        %v422 = vunpack.c.h.b16 %v358
        %v423 = vunpack.c.l.b16 %v359
        %v424 = vunpack.c.h.b16 %v359
        %v425 = vunpack.c.l.b16 %v360
        %v426 = vunpack.c.h.b16 %v360
        %v427 = vunpack.c.l.b16 %v361
        %v428 = vunpack.c.h.b16 %v361
        %v429 = vunpack.c.l.b16 %v362
        %v430 = vunpack.c.h.b16 %v362
        %v431 = vunpack.c.l.b16 %v363
        %v432 = vunpack.c.h.b16 %v363
        %v433 = vunpack.c.l.b16 %v364
        %v434 = vunpack.c.h.b16 %v364
        %v435 = vunpack.c.l.b16 %v365
        %v436 = vunpack.c.h.b16 %v365
        %v437 = vunpack.c.l.b16 %v366
        %v438 = vunpack.c.h.b16 %v366
        %v439 = vpack.c.b16 %v397, %v391
        %v440 = vpack.c.b16 %v398, %v392
        %v441 = vpack.c.b16 %v399, %v393
        %v442 = vpack.c.b16 %v400, %v394
        %v443 = vpack.c.b16 %v401, %v395
        %v444 = vpack.c.b16 %v402, %v396
        %v445 = vpack.c.b16 %v409, %v403
        %v446 = vpack.c.b16 %v410, %v404
        %v447 = vpack.c.b16 %v411, %v405
        %v448 = vpack.c.b16 %v412, %v406
        %v449 = vpack.c.b16 %v413, %v407
        %v450 = vpack.c.b16 %v414, %v408
        %v451 = vpack.c.b16 %v421, %v415
        %v452 = vpack.c.b16 %v422, %v416
        %v453 = vpack.c.b16 %v423, %v417
        %v454 = vpack.c.b16 %v424, %v418
        %v455 = vpack.c.b16 %v425, %v419
        %v456 = vpack.c.b16 %v426, %v420
        %v457 = vpack.c.b16 %v433, %v427
        %v458 = vpack.c.b16 %v434, %v428
        %v459 = vpack.c.b16 %v435, %v429
        %v460 = vpack.c.b16 %v436, %v430
        %v461 = vpack.c.b16 %v437, %v431
        %v462 = vpack.c.b16 %v438, %v432
        %vm487 = vcmask 523264
        %v489 = vsel %vm487, %v342, 0
        %491 = vmatpush.bf16.msra.mxu0 0
        %492 = vmatpush.bf16.msra.mxu0 0
        %493 = vmatpush.bf16.msra.mxu0 0
        %494 = vmatpush.bf16.msra.mxu0 0
        %495 = vmatpush.bf16.msra.mxu0 %v457
        %496 = vmatpush.bf16.msra.mxu0 %v451
        %497 = vmatpush.bf16.msra.mxu0 %v445
        %498 = vmatpush.bf16.msra.mxu0 %v439
        %499 = vmatmul.bf16.gmra.mxu0 %v489
        %v500 = vpop.f32.mrf.mxu0
        %v501 = vadd.f32 0.0, %v500
        %v502 = vpop.f32.mrf.mxu0
        %503 = vdwg.mxu0
        %504 = vmatpush.bf16.msra.mxu0 0
        %505 = vmatpush.bf16.msra.mxu0 0
        %506 = vmatpush.bf16.msra.mxu0 0
        %507 = vmatpush.bf16.msra.mxu0 0
        %508 = vmatpush.bf16.msra.mxu0 %v458
        %509 = vmatpush.bf16.msra.mxu0 %v452
        %510 = vmatpush.bf16.msra.mxu0 %v446
        %511 = vmatpush.bf16.msra.mxu0 %v440
        %512 = vmatmul.bf16.gmra.mxu0 %v489
        %v513 = vpop.f32.mrf.mxu0
        %v514 = vadd.f32 0.0, %v513
        %v515 = vpop.f32.mrf.mxu0
        %516 = vdwg.mxu0
        %517 = vmatpush.bf16.msra.mxu0 0
        %518 = vmatpush.bf16.msra.mxu0 0
        %519 = vmatpush.bf16.msra.mxu0 0
        %520 = vmatpush.bf16.msra.mxu0 0
        %521 = vmatpush.bf16.msra.mxu0 %v459
        %522 = vmatpush.bf16.msra.mxu0 %v453
        %523 = vmatpush.bf16.msra.mxu0 %v447
        %524 = vmatpush.bf16.msra.mxu0 %v441
        %525 = vmatmul.bf16.gmra.mxu0 %v489
        %v526 = vpop.f32.mrf.mxu0
        %v527 = vadd.f32 0.0, %v526
        %v528 = vpop.f32.mrf.mxu0
        %529 = vdwg.mxu0
        %530 = vmatpush.bf16.msra.mxu0 0
        %531 = vmatpush.bf16.msra.mxu0 0
        %532 = vmatpush.bf16.msra.mxu0 0
        %533 = vmatpush.bf16.msra.mxu0 0
        %534 = vmatpush.bf16.msra.mxu0 %v460
        %535 = vmatpush.bf16.msra.mxu0 %v454
        %536 = vmatpush.bf16.msra.mxu0 %v448
        %537 = vmatpush.bf16.msra.mxu0 %v442
        %538 = vmatmul.bf16.gmra.mxu0 %v489
        %v539 = vpop.f32.mrf.mxu0
        %v540 = vadd.f32 0.0, %v539
        %v541 = vpop.f32.mrf.mxu0
        %542 = vdwg.mxu0
        %543 = vmatpush.bf16.msra.mxu0 0
        %544 = vmatpush.bf16.msra.mxu0 0
        %545 = vmatpush.bf16.msra.mxu0 0
        %546 = vmatpush.bf16.msra.mxu0 0
        %547 = vmatpush.bf16.msra.mxu0 %v461
        %548 = vmatpush.bf16.msra.mxu0 %v455
        %549 = vmatpush.bf16.msra.mxu0 %v449
        %550 = vmatpush.bf16.msra.mxu0 %v443
        %551 = vmatmul.bf16.gmra.mxu0 %v489
        %v552 = vpop.f32.mrf.mxu0
        %v553 = vadd.f32 0.0, %v552
        %v554 = vpop.f32.mrf.mxu0
        %555 = vdwg.mxu0
        %556 = vmatpush.bf16.msra.mxu0 0
        %557 = vmatpush.bf16.msra.mxu0 0
        %558 = vmatpush.bf16.msra.mxu0 0
        %559 = vmatpush.bf16.msra.mxu0 0
        %560 = vmatpush.bf16.msra.mxu0 %v462
        %561 = vmatpush.bf16.msra.mxu0 %v456
        %562 = vmatpush.bf16.msra.mxu0 %v450
        %563 = vmatpush.bf16.msra.mxu0 %v444
        %564 = vmatmul.bf16.gmra.mxu0 %v489
        %v565 = vpop.f32.mrf.mxu0
        %v566 = vadd.f32 0.0, %v565
        %v567 = vpop.f32.mrf.mxu0
        %568 = vdwg.mxu0
        %v569 = vmax.f32 %v501, %v540
        %v570 = vmax.f32 %v514, %v553
        %v571 = vmax.f32 %v527, %v566
        %v572 = vmax.f32 %v569, 0.0
        %v573 = vmax.f32 %v570, 0.0
        %v574 = vmax.f32 %v571, 0.0
        %v575 = vpack.c.bf16 %v572, %v572
        %v576 = vpack.c.bf16 %v573, %v573
        %v577 = vpack.c.bf16 %v574, %v574
        %v578 = vld [vmem:[#allocation4] sm:$0xff]
        %v579 = vld [vmem:[#allocation4 + $0x8] sm:$0xff]
        %v580 = vld [vmem:[#allocation4 + $0x10] sm:$0xff]
        %v581 = vld [vmem:[#allocation4 + $0x18] sm:$0xff]
        %v582 = vld [vmem:[#allocation4 + $0x20] sm:$0xff]
        %v583 = vld [vmem:[#allocation4 + $0x28] sm:$0xff]
        %v584 = vld [vmem:[#allocation4 + $0x30] sm:$0xff]
        %v585 = vld [vmem:[#allocation4 + $0x38] sm:$0xff]
        %v586 = vld [vmem:[#allocation4 + $0x40] sm:$0xff]
        %v587 = vld [vmem:[#allocation4 + $0x48] sm:$0xff]
        %v588 = vld [vmem:[#allocation4 + $0x50] sm:$0xff]
        %v589 = vld [vmem:[#allocation4 + $0x58] sm:$0xff]
        %v590 = vld [vmem:[#allocation4 + $0x60] sm:$0xff]
        %v591 = vld [vmem:[#allocation4 + $0x68] sm:$0xff]
        %v592 = vld [vmem:[#allocation4 + $0x70] sm:$0xff]
        %v593 = vld [vmem:[#allocation4 + $0x78] sm:$0xff]
        %v594 = vld [vmem:[#allocation4 + $0x80] sm:$0xff]
        %v595 = vld [vmem:[#allocation4 + $0x88] sm:$0xff]
        %v596 = vld [vmem:[#allocation4 + $0x90] sm:$0xff]
        %v597 = vld [vmem:[#allocation4 + $0x98] sm:$0xff]
        %v598 = vld [vmem:[#allocation4 + $0xa0] sm:$0xff]
        %v599 = vld [vmem:[#allocation4 + $0xa8] sm:$0xff]
        %v600 = vld [vmem:[#allocation4 + $0xb0] sm:$0xff]
        %v601 = vld [vmem:[#allocation4 + $0xb8] sm:$0xff]
        %v602 = vld [vmem:[#allocation4 + $0xc0] sm:$0xff]
        %v603 = vld [vmem:[#allocation4 + $0xc8] sm:$0xff]
        %v604 = vld [vmem:[#allocation4 + $0xd0] sm:$0xff]
        %v605 = vld [vmem:[#allocation4 + $0xd8] sm:$0xff]
        %v606 = vld [vmem:[#allocation4 + $0xe0] sm:$0xff]
        %v607 = vld [vmem:[#allocation4 + $0xe8] sm:$0xff]
        %v608 = vld [vmem:[#allocation4 + $0xf0] sm:$0xff]
        %v609 = vld [vmem:[#allocation4 + $0xf8] sm:$0xff]
        %v610 = vld [vmem:[#allocation4 + $0x100] sm:$0xff]
        %v611 = vld [vmem:[#allocation4 + $0x108] sm:$0xff]
        %v612 = vld [vmem:[#allocation4 + $0x110] sm:$0xff]
        %v613 = vld [vmem:[#allocation4 + $0x118] sm:$0xff]
        %v614 = vld [vmem:[#allocation4 + $0x120] sm:$0xff]
        %v615 = vld [vmem:[#allocation4 + $0x128] sm:$0xff]
        %v616 = vld [vmem:[#allocation4 + $0x130] sm:$0xff]
        %v617 = vld [vmem:[#allocation4 + $0x138] sm:$0xff]
        %v618 = vld [vmem:[#allocation4 + $0x140] sm:$0xff]
        %v619 = vld [vmem:[#allocation4 + $0x148] sm:$0xff]
        %v620 = vld [vmem:[#allocation4 + $0x150] sm:$0xff]
        %v621 = vld [vmem:[#allocation4 + $0x158] sm:$0xff]
        %v622 = vld [vmem:[#allocation4 + $0x160] sm:$0xff]
        %v623 = vld [vmem:[#allocation4 + $0x168] sm:$0xff]
        %v624 = vld [vmem:[#allocation4 + $0x170] sm:$0xff]
        %v625 = vld [vmem:[#allocation4 + $0x178] sm:$0xff]
        %v626 = vld [vmem:[#allocation4 + $0x180] sm:$0xff]
        %v627 = vld [vmem:[#allocation4 + $0x188] sm:$0xff]
        %v628 = vld [vmem:[#allocation4 + $0x190] sm:$0xff]
        %v629 = vld [vmem:[#allocation4 + $0x198] sm:$0xff]
        %v630 = vld [vmem:[#allocation4 + $0x1a0] sm:$0xff]
        %v631 = vld [vmem:[#allocation4 + $0x1a8] sm:$0xff]
        %v632 = vld [vmem:[#allocation4 + $0x1b0] sm:$0xff]
        %v633 = vld [vmem:[#allocation4 + $0x1b8] sm:$0xff]
        %v634 = vld [vmem:[#allocation4 + $0x1c0] sm:$0xff]
        %v635 = vld [vmem:[#allocation4 + $0x1c8] sm:$0xff]
        %v636 = vld [vmem:[#allocation4 + $0x1d0] sm:$0xff]
        %v637 = vld [vmem:[#allocation4 + $0x1d8] sm:$0xff]
        %v638 = vld [vmem:[#allocation4 + $0x1e0] sm:$0xff]
        %v639 = vld [vmem:[#allocation4 + $0x1e8] sm:$0xff]
        %v640 = vld [vmem:[#allocation4 + $0x1f0] sm:$0xff]
        %v641 = vld [vmem:[#allocation4 + $0x1f8] sm:$0xff]
        %v642 = vld [vmem:[#allocation4 + $0x200] sm:$0xff]
        %v643 = vld [vmem:[#allocation4 + $0x208] sm:$0xff]
        %v644 = vld [vmem:[#allocation4 + $0x210] sm:$0xff]
        %v645 = vld [vmem:[#allocation4 + $0x218] sm:$0xff]
        %v646 = vld [vmem:[#allocation4 + $0x220] sm:$0xff]
        %v647 = vld [vmem:[#allocation4 + $0x228] sm:$0xff]
        %v648 = vld [vmem:[#allocation4 + $0x230] sm:$0xff]
        %v649 = vld [vmem:[#allocation4 + $0x238] sm:$0xff]
        %v650 = vld [vmem:[#allocation4 + $0x240] sm:$0xff]
        %v651 = vld [vmem:[#allocation4 + $0x248] sm:$0xff]
        %v652 = vld [vmem:[#allocation4 + $0x250] sm:$0xff]
        %v653 = vld [vmem:[#allocation4 + $0x258] sm:$0xff]
        %v654 = vld [vmem:[#allocation4 + $0x260] sm:$0xff]
        %v655 = vld [vmem:[#allocation4 + $0x268] sm:$0xff]
        %v656 = vld [vmem:[#allocation4 + $0x270] sm:$0xff]
        %v657 = vld [vmem:[#allocation4 + $0x278] sm:$0xff]
        %v658 = vld [vmem:[#allocation4 + $0x280] sm:$0xff]
        %v659 = vld [vmem:[#allocation4 + $0x288] sm:$0xff]
        %v660 = vld [vmem:[#allocation4 + $0x290] sm:$0xff]
        %v661 = vld [vmem:[#allocation4 + $0x298] sm:$0xff]
        %v662 = vld [vmem:[#allocation4 + $0x2a0] sm:$0xff]
        %v663 = vld [vmem:[#allocation4 + $0x2a8] sm:$0xff]
        %v664 = vld [vmem:[#allocation4 + $0x2b0] sm:$0xff]
        %v665 = vld [vmem:[#allocation4 + $0x2b8] sm:$0xff]
        %v666 = vld [vmem:[#allocation4 + $0x2c0] sm:$0xff]
        %v667 = vld [vmem:[#allocation4 + $0x2c8] sm:$0xff]
        %v668 = vld [vmem:[#allocation4 + $0x2d0] sm:$0xff]
        %v669 = vld [vmem:[#allocation4 + $0x2d8] sm:$0xff]
        %v670 = vld [vmem:[#allocation4 + $0x2e0] sm:$0xff]
        %v671 = vld [vmem:[#allocation4 + $0x2e8] sm:$0xff]
        %v672 = vld [vmem:[#allocation4 + $0x2f0] sm:$0xff]
        %v673 = vld [vmem:[#allocation4 + $0x2f8] sm:$0xff]
        %v770 = vunpack.c.l.b16 %v578
        %v771 = vunpack.c.h.b16 %v578
        %v772 = vunpack.c.l.b16 %v579
        %v773 = vunpack.c.h.b16 %v579
        %v774 = vunpack.c.l.b16 %v580
        %v775 = vunpack.c.h.b16 %v580
        %v776 = vunpack.c.l.b16 %v581
        %v777 = vunpack.c.h.b16 %v581
        %v778 = vunpack.c.l.b16 %v582
        %v779 = vunpack.c.h.b16 %v582
        %v780 = vunpack.c.l.b16 %v583
        %v781 = vunpack.c.h.b16 %v583
        %v782 = vunpack.c.l.b16 %v584
        %v783 = vunpack.c.h.b16 %v584
        %v784 = vunpack.c.l.b16 %v585
        %v785 = vunpack.c.h.b16 %v585
        %v786 = vunpack.c.l.b16 %v586
        %v787 = vunpack.c.h.b16 %v586
        %v788 = vunpack.c.l.b16 %v587
        %v789 = vunpack.c.h.b16 %v587
        %v790 = vunpack.c.l.b16 %v588
        %v791 = vunpack.c.h.b16 %v588
        %v792 = vunpack.c.l.b16 %v589
        %v793 = vunpack.c.h.b16 %v589
        %v794 = vunpack.c.l.b16 %v590
        %v795 = vunpack.c.h.b16 %v590
        %v796 = vunpack.c.l.b16 %v591
        %v797 = vunpack.c.h.b16 %v591
        %v798 = vunpack.c.l.b16 %v592
        %v799 = vunpack.c.h.b16 %v592
        %v800 = vunpack.c.l.b16 %v593
        %v801 = vunpack.c.h.b16 %v593
        %v802 = vunpack.c.l.b16 %v594
        %v803 = vunpack.c.h.b16 %v594
        %v804 = vunpack.c.l.b16 %v595
        %v805 = vunpack.c.h.b16 %v595
        %v806 = vunpack.c.l.b16 %v596
        %v807 = vunpack.c.h.b16 %v596
        %v808 = vunpack.c.l.b16 %v597
        %v809 = vunpack.c.h.b16 %v597
        %v810 = vunpack.c.l.b16 %v598
        %v811 = vunpack.c.h.b16 %v598
        %v812 = vunpack.c.l.b16 %v599
        %v813 = vunpack.c.h.b16 %v599
        %v814 = vunpack.c.l.b16 %v600
        %v815 = vunpack.c.h.b16 %v600
        %v816 = vunpack.c.l.b16 %v601
        %v817 = vunpack.c.h.b16 %v601
        %v818 = vunpack.c.l.b16 %v602
        %v819 = vunpack.c.h.b16 %v602
        %v820 = vunpack.c.l.b16 %v603
        %v821 = vunpack.c.h.b16 %v603
        %v822 = vunpack.c.l.b16 %v604
        %v823 = vunpack.c.h.b16 %v604
        %v824 = vunpack.c.l.b16 %v605
        %v825 = vunpack.c.h.b16 %v605
        %v826 = vunpack.c.l.b16 %v606
        %v827 = vunpack.c.h.b16 %v606
        %v828 = vunpack.c.l.b16 %v607
        %v829 = vunpack.c.h.b16 %v607
        %v830 = vunpack.c.l.b16 %v608
        %v831 = vunpack.c.h.b16 %v608
        %v832 = vunpack.c.l.b16 %v609
        %v833 = vunpack.c.h.b16 %v609
        %v834 = vunpack.c.l.b16 %v610
        %v835 = vunpack.c.h.b16 %v610
        %v836 = vunpack.c.l.b16 %v611
        %v837 = vunpack.c.h.b16 %v611
        %v838 = vunpack.c.l.b16 %v612
        %v839 = vunpack.c.h.b16 %v612
        %v840 = vunpack.c.l.b16 %v613
        %v841 = vunpack.c.h.b16 %v613
        %v842 = vunpack.c.l.b16 %v614
        %v843 = vunpack.c.h.b16 %v614
        %v844 = vunpack.c.l.b16 %v615
        %v845 = vunpack.c.h.b16 %v615
        %v846 = vunpack.c.l.b16 %v616
        %v847 = vunpack.c.h.b16 %v616
        %v848 = vunpack.c.l.b16 %v617
        %v849 = vunpack.c.h.b16 %v617
        %v850 = vunpack.c.l.b16 %v618
        %v851 = vunpack.c.h.b16 %v618
        %v852 = vunpack.c.l.b16 %v619
        %v853 = vunpack.c.h.b16 %v619
        %v854 = vunpack.c.l.b16 %v620
        %v855 = vunpack.c.h.b16 %v620
        %v856 = vunpack.c.l.b16 %v621
        %v857 = vunpack.c.h.b16 %v621
        %v858 = vunpack.c.l.b16 %v622
        %v859 = vunpack.c.h.b16 %v622
        %v860 = vunpack.c.l.b16 %v623
        %v861 = vunpack.c.h.b16 %v623
        %v862 = vunpack.c.l.b16 %v624
        %v863 = vunpack.c.h.b16 %v624
        %v864 = vunpack.c.l.b16 %v625
        %v865 = vunpack.c.h.b16 %v625
        %v866 = vunpack.c.l.b16 %v626
        %v867 = vunpack.c.h.b16 %v626
        %v868 = vunpack.c.l.b16 %v627
        %v869 = vunpack.c.h.b16 %v627
        %v870 = vunpack.c.l.b16 %v628
        %v871 = vunpack.c.h.b16 %v628
        %v872 = vunpack.c.l.b16 %v629
        %v873 = vunpack.c.h.b16 %v629
        %v874 = vunpack.c.l.b16 %v630
        %v875 = vunpack.c.h.b16 %v630
        %v876 = vunpack.c.l.b16 %v631
        %v877 = vunpack.c.h.b16 %v631
        %v878 = vunpack.c.l.b16 %v632
        %v879 = vunpack.c.h.b16 %v632
        %v880 = vunpack.c.l.b16 %v633
        %v881 = vunpack.c.h.b16 %v633
        %v882 = vunpack.c.l.b16 %v634
        %v883 = vunpack.c.h.b16 %v634
        %v884 = vunpack.c.l.b16 %v635
        %v885 = vunpack.c.h.b16 %v635
        %v886 = vunpack.c.l.b16 %v636
        %v887 = vunpack.c.h.b16 %v636
        %v888 = vunpack.c.l.b16 %v637
        %v889 = vunpack.c.h.b16 %v637
        %v890 = vunpack.c.l.b16 %v638
        %v891 = vunpack.c.h.b16 %v638
        %v892 = vunpack.c.l.b16 %v639
        %v893 = vunpack.c.h.b16 %v639
        %v894 = vunpack.c.l.b16 %v640
        %v895 = vunpack.c.h.b16 %v640
        %v896 = vunpack.c.l.b16 %v641
        %v897 = vunpack.c.h.b16 %v641
        %v898 = vunpack.c.l.b16 %v642
        %v899 = vunpack.c.h.b16 %v642
        %v900 = vunpack.c.l.b16 %v643
        %v901 = vunpack.c.h.b16 %v643
        %v902 = vunpack.c.l.b16 %v644
        %v903 = vunpack.c.h.b16 %v644
        %v904 = vunpack.c.l.b16 %v645
        %v905 = vunpack.c.h.b16 %v645
        %v906 = vunpack.c.l.b16 %v646
        %v907 = vunpack.c.h.b16 %v646
        %v908 = vunpack.c.l.b16 %v647
        %v909 = vunpack.c.h.b16 %v647
        %v910 = vunpack.c.l.b16 %v648
        %v911 = vunpack.c.h.b16 %v648
        %v912 = vunpack.c.l.b16 %v649
        %v913 = vunpack.c.h.b16 %v649
        %v914 = vunpack.c.l.b16 %v650
        %v915 = vunpack.c.h.b16 %v650
        %v916 = vunpack.c.l.b16 %v651
        %v917 = vunpack.c.h.b16 %v651
        %v918 = vunpack.c.l.b16 %v652
        %v919 = vunpack.c.h.b16 %v652
        %v920 = vunpack.c.l.b16 %v653
        %v921 = vunpack.c.h.b16 %v653
        %v922 = vunpack.c.l.b16 %v654
        %v923 = vunpack.c.h.b16 %v654
        %v924 = vunpack.c.l.b16 %v655
        %v925 = vunpack.c.h.b16 %v655
        %v926 = vunpack.c.l.b16 %v656
        %v927 = vunpack.c.h.b16 %v656
        %v928 = vunpack.c.l.b16 %v657
        %v929 = vunpack.c.h.b16 %v657
        %v930 = vunpack.c.l.b16 %v658
        %v931 = vunpack.c.h.b16 %v658
        %v932 = vunpack.c.l.b16 %v659
        %v933 = vunpack.c.h.b16 %v659
        %v934 = vunpack.c.l.b16 %v660
        %v935 = vunpack.c.h.b16 %v660
        %v936 = vunpack.c.l.b16 %v661
        %v937 = vunpack.c.h.b16 %v661
        %v938 = vunpack.c.l.b16 %v662
        %v939 = vunpack.c.h.b16 %v662
        %v940 = vunpack.c.l.b16 %v663
        %v941 = vunpack.c.h.b16 %v663
        %v942 = vunpack.c.l.b16 %v664
        %v943 = vunpack.c.h.b16 %v664
        %v944 = vunpack.c.l.b16 %v665
        %v945 = vunpack.c.h.b16 %v665
        %v946 = vunpack.c.l.b16 %v666
        %v947 = vunpack.c.h.b16 %v666
        %v948 = vunpack.c.l.b16 %v667
        %v949 = vunpack.c.h.b16 %v667
        %v950 = vunpack.c.l.b16 %v668
        %v951 = vunpack.c.h.b16 %v668
        %v952 = vunpack.c.l.b16 %v669
        %v953 = vunpack.c.h.b16 %v669
        %v954 = vunpack.c.l.b16 %v670
        %v955 = vunpack.c.h.b16 %v670
        %v956 = vunpack.c.l.b16 %v671
        %v957 = vunpack.c.h.b16 %v671
        %v958 = vunpack.c.l.b16 %v672
        %v959 = vunpack.c.h.b16 %v672
        %v960 = vunpack.c.l.b16 %v673
        %v961 = vunpack.c.h.b16 %v673
        %v962 = vpack.c.b16 %v774, %v770
        %v963 = vpack.c.b16 %v775, %v771
        %v964 = vpack.c.b16 %v776, %v772
        %v965 = vpack.c.b16 %v777, %v773
        %v966 = vpack.c.b16 %v782, %v778
        %v967 = vpack.c.b16 %v783, %v779
        %v968 = vpack.c.b16 %v784, %v780
        %v969 = vpack.c.b16 %v785, %v781
        %v970 = vpack.c.b16 %v790, %v786
        %v971 = vpack.c.b16 %v791, %v787
        %v972 = vpack.c.b16 %v792, %v788
        %v973 = vpack.c.b16 %v793, %v789
        %v974 = vpack.c.b16 %v798, %v794
        %v975 = vpack.c.b16 %v799, %v795
        %v976 = vpack.c.b16 %v800, %v796
        %v977 = vpack.c.b16 %v801, %v797
        %v978 = vpack.c.b16 %v806, %v802
        %v979 = vpack.c.b16 %v807, %v803
        %v980 = vpack.c.b16 %v808, %v804
        %v981 = vpack.c.b16 %v809, %v805
        %v982 = vpack.c.b16 %v814, %v810
        %v983 = vpack.c.b16 %v815, %v811
        %v984 = vpack.c.b16 %v816, %v812
        %v985 = vpack.c.b16 %v817, %v813
        %v986 = vpack.c.b16 %v822, %v818
        %v987 = vpack.c.b16 %v823, %v819
        %v988 = vpack.c.b16 %v824, %v820
        %v989 = vpack.c.b16 %v825, %v821
        %v990 = vpack.c.b16 %v830, %v826
        %v991 = vpack.c.b16 %v831, %v827
        %v992 = vpack.c.b16 %v832, %v828
        %v993 = vpack.c.b16 %v833, %v829
        %v994 = vpack.c.b16 %v838, %v834
        %v995 = vpack.c.b16 %v839, %v835
        %v996 = vpack.c.b16 %v840, %v836
        %v997 = vpack.c.b16 %v841, %v837
        %v998 = vpack.c.b16 %v846, %v842
        %v999 = vpack.c.b16 %v847, %v843
        %v1000 = vpack.c.b16 %v848, %v844
        %v1001 = vpack.c.b16 %v849, %v845
        %v1002 = vpack.c.b16 %v854, %v850
        %v1003 = vpack.c.b16 %v855, %v851
        %v1004 = vpack.c.b16 %v856, %v852
        %v1005 = vpack.c.b16 %v857, %v853
        %v1006 = vpack.c.b16 %v862, %v858
        %v1007 = vpack.c.b16 %v863, %v859
        %v1008 = vpack.c.b16 %v864, %v860
        %v1009 = vpack.c.b16 %v865, %v861
        %v1010 = vpack.c.b16 %v870, %v866
        %v1011 = vpack.c.b16 %v871, %v867
        %v1012 = vpack.c.b16 %v872, %v868
        %v1013 = vpack.c.b16 %v873, %v869
        %v1014 = vpack.c.b16 %v878, %v874
        %v1015 = vpack.c.b16 %v879, %v875
        %v1016 = vpack.c.b16 %v880, %v876
        %v1017 = vpack.c.b16 %v881, %v877
        %v1018 = vpack.c.b16 %v886, %v882
        %v1019 = vpack.c.b16 %v887, %v883
        %v1020 = vpack.c.b16 %v888, %v884
        %v1021 = vpack.c.b16 %v889, %v885
        %v1022 = vpack.c.b16 %v894, %v890
        %v1023 = vpack.c.b16 %v895, %v891
        %v1024 = vpack.c.b16 %v896, %v892
        %v1025 = vpack.c.b16 %v897, %v893
        %v1026 = vpack.c.b16 %v902, %v898
        %v1027 = vpack.c.b16 %v903, %v899
        %v1028 = vpack.c.b16 %v904, %v900
        %v1029 = vpack.c.b16 %v905, %v901
        %v1030 = vpack.c.b16 %v910, %v906
        %v1031 = vpack.c.b16 %v911, %v907
        %v1032 = vpack.c.b16 %v912, %v908
        %v1033 = vpack.c.b16 %v913, %v909
        %v1034 = vpack.c.b16 %v918, %v914
        %v1035 = vpack.c.b16 %v919, %v915
        %v1036 = vpack.c.b16 %v920, %v916
        %v1037 = vpack.c.b16 %v921, %v917
        %v1038 = vpack.c.b16 %v926, %v922
        %v1039 = vpack.c.b16 %v927, %v923
        %v1040 = vpack.c.b16 %v928, %v924
        %v1041 = vpack.c.b16 %v929, %v925
        %v1042 = vpack.c.b16 %v934, %v930
        %v1043 = vpack.c.b16 %v935, %v931
        %v1044 = vpack.c.b16 %v936, %v932
        %v1045 = vpack.c.b16 %v937, %v933
        %v1046 = vpack.c.b16 %v942, %v938
        %v1047 = vpack.c.b16 %v943, %v939
        %v1048 = vpack.c.b16 %v944, %v940
        %v1049 = vpack.c.b16 %v945, %v941
        %v1050 = vpack.c.b16 %v950, %v946
        %v1051 = vpack.c.b16 %v951, %v947
        %v1052 = vpack.c.b16 %v952, %v948
        %v1053 = vpack.c.b16 %v953, %v949
        %v1054 = vpack.c.b16 %v958, %v954
        %v1055 = vpack.c.b16 %v959, %v955
        %v1056 = vpack.c.b16 %v960, %v956
        %v1057 = vpack.c.b16 %v961, %v957
        %1154 = vmatpush.bf16.msra.mxu0 %v990
        %1155 = vmatpush.bf16.msra.mxu0 %v986
        %1156 = vmatpush.bf16.msra.mxu0 %v982
        %1157 = vmatpush.bf16.msra.mxu0 %v978
        %1158 = vmatpush.bf16.msra.mxu0 %v974
        %1159 = vmatpush.bf16.msra.mxu0 %v970
        %1160 = vmatpush.bf16.msra.mxu0 %v966
        %1161 = vmatpush.bf16.msra.mxu0 %v962
        %1162 = vmatmul.bf16.gmra.mxu0 %v575
        %v1163 = vpop.f32.mrf.mxu0
        %v1164 = vadd.f32 0.0, %v1163
        %v1165 = vpop.f32.mrf.mxu0
        %1166 = vdwg.mxu0
        %1167 = vmatpush.bf16.msra.mxu0 %v1022
        %1168 = vmatpush.bf16.msra.mxu0 %v1018
        %1169 = vmatpush.bf16.msra.mxu0 %v1014
        %1170 = vmatpush.bf16.msra.mxu0 %v1010
        %1171 = vmatpush.bf16.msra.mxu0 %v1006
        %1172 = vmatpush.bf16.msra.mxu0 %v1002
        %1173 = vmatpush.bf16.msra.mxu0 %v998
        %1174 = vmatpush.bf16.msra.mxu0 %v994
        %1175 = vmatmul.bf16.gmra.mxu0 %v576
        %v1176 = vpop.f32.mrf.mxu0
        %v1177 = vadd.f32 %v1164, %v1176
        %v1178 = vpop.f32.mrf.mxu0
        %1179 = vdwg.mxu0
        %1180 = vmatpush.bf16.msra.mxu0 %v1054
        %1181 = vmatpush.bf16.msra.mxu0 %v1050
        %1182 = vmatpush.bf16.msra.mxu0 %v1046
        %1183 = vmatpush.bf16.msra.mxu0 %v1042
        %1184 = vmatpush.bf16.msra.mxu0 %v1038
        %1185 = vmatpush.bf16.msra.mxu0 %v1034
        %1186 = vmatpush.bf16.msra.mxu0 %v1030
        %1187 = vmatpush.bf16.msra.mxu0 %v1026
        %1188 = vmatmul.bf16.gmra.mxu0 %v577
        %v1189 = vpop.f32.mrf.mxu0
        %v1190 = vadd.f32 %v1177, %v1189
        %v1191 = vpop.f32.mrf.mxu0
        %1192 = vdwg.mxu0
        %1193 = vmatpush.bf16.msra.mxu0 %v991
        %1194 = vmatpush.bf16.msra.mxu0 %v987
        %1195 = vmatpush.bf16.msra.mxu0 %v983
        %1196 = vmatpush.bf16.msra.mxu0 %v979
        %1197 = vmatpush.bf16.msra.mxu0 %v975
        %1198 = vmatpush.bf16.msra.mxu0 %v971
        %1199 = vmatpush.bf16.msra.mxu0 %v967
        %1200 = vmatpush.bf16.msra.mxu0 %v963
        %1201 = vmatmul.bf16.gmra.mxu0 %v575
        %v1202 = vpop.f32.mrf.mxu0
        %v1203 = vadd.f32 0.0, %v1202
        %v1204 = vpop.f32.mrf.mxu0
        %1205 = vdwg.mxu0
        %1206 = vmatpush.bf16.msra.mxu0 %v1023
        %1207 = vmatpush.bf16.msra.mxu0 %v1019
        %1208 = vmatpush.bf16.msra.mxu0 %v1015
        %1209 = vmatpush.bf16.msra.mxu0 %v1011
        %1210 = vmatpush.bf16.msra.mxu0 %v1007
        %1211 = vmatpush.bf16.msra.mxu0 %v1003
        %1212 = vmatpush.bf16.msra.mxu0 %v999
        %1213 = vmatpush.bf16.msra.mxu0 %v995
        %1214 = vmatmul.bf16.gmra.mxu0 %v576
        %v1215 = vpop.f32.mrf.mxu0
        %v1216 = vadd.f32 %v1203, %v1215
        %v1217 = vpop.f32.mrf.mxu0
        %1218 = vdwg.mxu0
        %1219 = vmatpush.bf16.msra.mxu0 %v1055
        %1220 = vmatpush.bf16.msra.mxu0 %v1051
        %1221 = vmatpush.bf16.msra.mxu0 %v1047
        %1222 = vmatpush.bf16.msra.mxu0 %v1043
        %1223 = vmatpush.bf16.msra.mxu0 %v1039
        %1224 = vmatpush.bf16.msra.mxu0 %v1035
        %1225 = vmatpush.bf16.msra.mxu0 %v1031
        %1226 = vmatpush.bf16.msra.mxu0 %v1027
        %1227 = vmatmul.bf16.gmra.mxu0 %v577
        %v1228 = vpop.f32.mrf.mxu0
        %v1229 = vadd.f32 %v1216, %v1228
        %v1230 = vpop.f32.mrf.mxu0
        %1231 = vdwg.mxu0
        %1232 = vmatpush.bf16.msra.mxu0 %v992
        %1233 = vmatpush.bf16.msra.mxu0 %v988
        %1234 = vmatpush.bf16.msra.mxu0 %v984
        %1235 = vmatpush.bf16.msra.mxu0 %v980
        %1236 = vmatpush.bf16.msra.mxu0 %v976
        %1237 = vmatpush.bf16.msra.mxu0 %v972
        %1238 = vmatpush.bf16.msra.mxu0 %v968
        %1239 = vmatpush.bf16.msra.mxu0 %v964
        %1240 = vmatmul.bf16.gmra.mxu0 %v575
        %v1241 = vpop.f32.mrf.mxu0
        %v1242 = vadd.f32 0.0, %v1241
        %v1243 = vpop.f32.mrf.mxu0
        %1244 = vdwg.mxu0
        %1245 = vmatpush.bf16.msra.mxu0 %v1024
        %1246 = vmatpush.bf16.msra.mxu0 %v1020
        %1247 = vmatpush.bf16.msra.mxu0 %v1016
        %1248 = vmatpush.bf16.msra.mxu0 %v1012
        %1249 = vmatpush.bf16.msra.mxu0 %v1008
        %1250 = vmatpush.bf16.msra.mxu0 %v1004
        %1251 = vmatpush.bf16.msra.mxu0 %v1000
        %1252 = vmatpush.bf16.msra.mxu0 %v996
        %1253 = vmatmul.bf16.gmra.mxu0 %v576
        %v1254 = vpop.f32.mrf.mxu0
        %v1255 = vadd.f32 %v1242, %v1254
        %v1256 = vpop.f32.mrf.mxu0
        %1257 = vdwg.mxu0
        %1258 = vmatpush.bf16.msra.mxu0 %v1056
        %1259 = vmatpush.bf16.msra.mxu0 %v1052
        %1260 = vmatpush.bf16.msra.mxu0 %v1048
        %1261 = vmatpush.bf16.msra.mxu0 %v1044
        %1262 = vmatpush.bf16.msra.mxu0 %v1040
        %1263 = vmatpush.bf16.msra.mxu0 %v1036
        %1264 = vmatpush.bf16.msra.mxu0 %v1032
        %1265 = vmatpush.bf16.msra.mxu0 %v1028
        %1266 = vmatmul.bf16.gmra.mxu0 %v577
        %v1267 = vpop.f32.mrf.mxu0
        %v1268 = vadd.f32 %v1255, %v1267
        %v1269 = vpop.f32.mrf.mxu0
        %1270 = vdwg.mxu0
        %1271 = vmatpush.bf16.msra.mxu0 %v993
        %1272 = vmatpush.bf16.msra.mxu0 %v989
        %1273 = vmatpush.bf16.msra.mxu0 %v985
        %1274 = vmatpush.bf16.msra.mxu0 %v981
        %1275 = vmatpush.bf16.msra.mxu0 %v977
        %1276 = vmatpush.bf16.msra.mxu0 %v973
        %1277 = vmatpush.bf16.msra.mxu0 %v969
        %1278 = vmatpush.bf16.msra.mxu0 %v965
        %1279 = vmatmul.bf16.gmra.mxu0 %v575
        %v1280 = vpop.f32.mrf.mxu0
        %v1281 = vadd.f32 0.0, %v1280
        %v1282 = vpop.f32.mrf.mxu0
        %1283 = vdwg.mxu0
        %1284 = vmatpush.bf16.msra.mxu0 %v1025
        %1285 = vmatpush.bf16.msra.mxu0 %v1021
        %1286 = vmatpush.bf16.msra.mxu0 %v1017
        %1287 = vmatpush.bf16.msra.mxu0 %v1013
        %1288 = vmatpush.bf16.msra.mxu0 %v1009
        %1289 = vmatpush.bf16.msra.mxu0 %v1005
        %1290 = vmatpush.bf16.msra.mxu0 %v1001
        %1291 = vmatpush.bf16.msra.mxu0 %v997
        %1292 = vmatmul.bf16.gmra.mxu0 %v576
        %v1293 = vpop.f32.mrf.mxu0
        %v1294 = vadd.f32 %v1281, %v1293
        %v1295 = vpop.f32.mrf.mxu0
        %1296 = vdwg.mxu0
        %1297 = vmatpush.bf16.msra.mxu0 %v1057
        %1298 = vmatpush.bf16.msra.mxu0 %v1053
        %1299 = vmatpush.bf16.msra.mxu0 %v1049
        %1300 = vmatpush.bf16.msra.mxu0 %v1045
        %1301 = vmatpush.bf16.msra.mxu0 %v1041
        %1302 = vmatpush.bf16.msra.mxu0 %v1037
        %1303 = vmatpush.bf16.msra.mxu0 %v1033
        %1304 = vmatpush.bf16.msra.mxu0 %v1029
        %1305 = vmatmul.bf16.gmra.mxu0 %v577
        %v1306 = vpop.f32.mrf.mxu0
        %v1307 = vadd.f32 %v1294, %v1306
        %v1308 = vpop.f32.mrf.mxu0
        %1309 = vdwg.mxu0
        %v1310 = vmax.f32 %v1190, %v1268
        %v1311 = vmax.f32 %v1229, %v1307
        %v1312 = vmax.f32 %v1310, 0.0
        %v1313 = vmax.f32 %v1311, 0.0
        %v1314 = vpack.c.bf16 %v1312, %v1312
        %v1315 = vpack.c.bf16 %v1313, %v1313
        %v1316 = vld [vmem:[#allocation6] sm:$0xf]
        %v1317 = vld [vmem:[#allocation6 + $0x4] sm:$0xf]
        %v1318 = vld [vmem:[#allocation6 + $0x8] sm:$0xf]
        %v1319 = vld [vmem:[#allocation6 + $0xc] sm:$0xf]
        %v1320 = vld [vmem:[#allocation6 + $0x10] sm:$0xf]
        %v1321 = vld [vmem:[#allocation6 + $0x14] sm:$0xf]
        %v1322 = vld [vmem:[#allocation6 + $0x18] sm:$0xf]
        %v1323 = vld [vmem:[#allocation6 + $0x1c] sm:$0xf]
        %v1324 = vld [vmem:[#allocation6 + $0x20] sm:$0xf]
        %v1325 = vld [vmem:[#allocation6 + $0x24] sm:$0xf]
        %v1326 = vld [vmem:[#allocation6 + $0x28] sm:$0xf]
        %v1327 = vld [vmem:[#allocation6 + $0x2c] sm:$0xf]
        %v1328 = vld [vmem:[#allocation6 + $0x30] sm:$0xf]
        %v1329 = vld [vmem:[#allocation6 + $0x34] sm:$0xf]
        %v1330 = vld [vmem:[#allocation6 + $0x38] sm:$0xf]
        %v1331 = vld [vmem:[#allocation6 + $0x3c] sm:$0xf]
        %v1332 = vld [vmem:[#allocation6 + $0x40] sm:$0xf]
        %v1333 = vld [vmem:[#allocation6 + $0x44] sm:$0xf]
        %v1334 = vld [vmem:[#allocation6 + $0x48] sm:$0xf]
        %v1335 = vld [vmem:[#allocation6 + $0x4c] sm:$0xf]
        %v1336 = vld [vmem:[#allocation6 + $0x50] sm:$0xf]
        %v1337 = vld [vmem:[#allocation6 + $0x54] sm:$0xf]
        %v1338 = vld [vmem:[#allocation6 + $0x58] sm:$0xf]
        %v1339 = vld [vmem:[#allocation6 + $0x5c] sm:$0xf]
        %v1340 = vld [vmem:[#allocation6 + $0x60] sm:$0xf]
        %v1341 = vld [vmem:[#allocation6 + $0x64] sm:$0xf]
        %v1342 = vld [vmem:[#allocation6 + $0x68] sm:$0xf]
        %v1343 = vld [vmem:[#allocation6 + $0x6c] sm:$0xf]
        %v1344 = vld [vmem:[#allocation6 + $0x70] sm:$0xf]
        %v1345 = vld [vmem:[#allocation6 + $0x74] sm:$0xf]
        %v1346 = vld [vmem:[#allocation6 + $0x78] sm:$0xf]
        %v1347 = vld [vmem:[#allocation6 + $0x7c] sm:$0xf]
        %v1348 = vld [vmem:[%s4] sm:$0x1]
        %v1350 = vperm.slane %v1348, 0
        %v1384 = vunpack.c.l.b16 %v1316
        %v1385 = vunpack.c.l.b16 %v1317
        %v1386 = vunpack.c.l.b16 %v1318
        %v1387 = vunpack.c.l.b16 %v1319
        %v1388 = vunpack.c.l.b16 %v1320
        %v1389 = vunpack.c.l.b16 %v1321
        %v1390 = vunpack.c.l.b16 %v1322
        %v1391 = vunpack.c.l.b16 %v1323
        %v1392 = vunpack.c.l.b16 %v1324
        %v1393 = vunpack.c.l.b16 %v1325
        %v1394 = vunpack.c.l.b16 %v1326
        %v1395 = vunpack.c.l.b16 %v1327
        %v1396 = vunpack.c.l.b16 %v1328
        %v1397 = vunpack.c.l.b16 %v1329
        %v1398 = vunpack.c.l.b16 %v1330
        %v1399 = vunpack.c.l.b16 %v1331
        %v1400 = vunpack.c.l.b16 %v1332
        %v1401 = vunpack.c.l.b16 %v1333
        %v1402 = vunpack.c.l.b16 %v1334
        %v1403 = vunpack.c.l.b16 %v1335
        %v1404 = vunpack.c.l.b16 %v1336
        %v1405 = vunpack.c.l.b16 %v1337
        %v1406 = vunpack.c.l.b16 %v1338
        %v1407 = vunpack.c.l.b16 %v1339
        %v1408 = vunpack.c.l.b16 %v1340
        %v1409 = vunpack.c.l.b16 %v1341
        %v1410 = vunpack.c.l.b16 %v1342
        %v1411 = vunpack.c.l.b16 %v1343
        %v1412 = vunpack.c.l.b16 %v1344
        %v1413 = vunpack.c.l.b16 %v1345
        %v1414 = vunpack.c.l.b16 %v1346
        %v1415 = vunpack.c.l.b16 %v1347
        %v1416 = vpack.c.b16 %v1385, %v1384
        %v1417 = vpack.c.b16 %v1387, %v1386
        %v1418 = vpack.c.b16 %v1389, %v1388
        %v1419 = vpack.c.b16 %v1391, %v1390
        %v1420 = vpack.c.b16 %v1393, %v1392
        %v1421 = vpack.c.b16 %v1395, %v1394
        %v1422 = vpack.c.b16 %v1397, %v1396
        %v1423 = vpack.c.b16 %v1399, %v1398
        %v1424 = vpack.c.b16 %v1401, %v1400
        %v1425 = vpack.c.b16 %v1403, %v1402
        %v1426 = vpack.c.b16 %v1405, %v1404
        %v1427 = vpack.c.b16 %v1407, %v1406
        %v1428 = vpack.c.b16 %v1409, %v1408
        %v1429 = vpack.c.b16 %v1411, %v1410
        %v1430 = vpack.c.b16 %v1413, %v1412
        %v1431 = vpack.c.b16 %v1415, %v1414
        %1448 = vmatpush.bf16.msra.mxu0 %v1423
        %1449 = vmatpush.bf16.msra.mxu0 %v1422
        %1450 = vmatpush.bf16.msra.mxu0 %v1421
        %1451 = vmatpush.bf16.msra.mxu0 %v1420
        %1452 = vmatpush.bf16.msra.mxu0 %v1419
        %1453 = vmatpush.bf16.msra.mxu0 %v1418
        %1454 = vmatpush.bf16.msra.mxu0 %v1417
        %1455 = vmatpush.bf16.msra.mxu0 %v1416
        %1456 = vmatmul.bf16.gmra.mxu0 %v1314
        %v1457 = vpop.f32.mrf.mxu0
        %v1458 = vadd.f32 %v1350, %v1457
        %v1459 = vpop.f32.mrf.mxu0
        %1460 = vdwg.mxu0
        %1461 = vmatpush.bf16.msra.mxu0 %v1431
        %1462 = vmatpush.bf16.msra.mxu0 %v1430
        %1463 = vmatpush.bf16.msra.mxu0 %v1429
        %1464 = vmatpush.bf16.msra.mxu0 %v1428
        %1465 = vmatpush.bf16.msra.mxu0 %v1427
        %1466 = vmatpush.bf16.msra.mxu0 %v1426
        %1467 = vmatpush.bf16.msra.mxu0 %v1425
        %1468 = vmatpush.bf16.msra.mxu0 %v1424
        %1469 = vmatmul.bf16.gmra.mxu0 %v1315
        %v1470 = vpop.f32.mrf.mxu0
        %v1471 = vadd.f32 %v1458, %v1470
        %v1472 = vpop.f32.mrf.mxu0
        %1473 = vdwg.mxu0
        %v1474 = vmax.f32 %v1471, 0.0
        %v1475 = vpack.c.bf16 %v1474, %v1474
        %v1476 = vld [vmem:[#allocation7] sm:$0xf]
        %v1477 = vld [vmem:[#allocation7 + $0x4] sm:$0xf]
        %v1478 = vld [vmem:[#allocation7 + $0x8] sm:$0xf]
        %v1479 = vld [vmem:[#allocation7 + $0xc] sm:$0xf]
        %v1480 = vld [vmem:[#allocation7 + $0x10] sm:$0xf]
        %v1481 = vld [vmem:[#allocation7 + $0x14] sm:$0xf]
        %v1482 = vld [vmem:[#allocation7 + $0x18] sm:$0xf]
        %v1483 = vld [vmem:[#allocation7 + $0x1c] sm:$0xf]
        %v1484 = vld [vmem:[#allocation7 + $0x20] sm:$0xf]
        %v1485 = vld [vmem:[#allocation7 + $0x24] sm:$0xf]
        %v1486 = vld [vmem:[#allocation7 + $0x28] sm:$0xf]
        %v1487 = vld [vmem:[#allocation7 + $0x2c] sm:$0xf]
        %v1488 = vld [vmem:[#allocation7 + $0x30] sm:$0xf]
        %v1489 = vld [vmem:[#allocation7 + $0x34] sm:$0xf]
        %v1490 = vld [vmem:[#allocation7 + $0x38] sm:$0xf]
        %v1491 = vld [vmem:[#allocation7 + $0x3c] sm:$0xf]
        %v1492 = vld [vmem:[%s6] sm:$0x1]
        %v1494 = vperm.slane %v1492, 0
        %v1512 = vunpack.c.l.b16 %v1476
        %v1513 = vunpack.c.l.b16 %v1477
        %v1514 = vunpack.c.l.b16 %v1478
        %v1515 = vunpack.c.l.b16 %v1479
        %v1516 = vunpack.c.l.b16 %v1480
        %v1517 = vunpack.c.l.b16 %v1481
        %v1518 = vunpack.c.l.b16 %v1482
        %v1519 = vunpack.c.l.b16 %v1483
        %v1520 = vunpack.c.l.b16 %v1484
        %v1521 = vunpack.c.l.b16 %v1485
        %v1522 = vunpack.c.l.b16 %v1486
        %v1523 = vunpack.c.l.b16 %v1487
        %v1524 = vunpack.c.l.b16 %v1488
        %v1525 = vunpack.c.l.b16 %v1489
        %v1526 = vunpack.c.l.b16 %v1490
        %v1527 = vunpack.c.l.b16 %v1491
        %v1528 = vpack.c.b16 %v1513, %v1512
        %v1529 = vpack.c.b16 %v1515, %v1514
        %v1530 = vpack.c.b16 %v1517, %v1516
        %v1531 = vpack.c.b16 %v1519, %v1518
        %v1532 = vpack.c.b16 %v1521, %v1520
        %v1533 = vpack.c.b16 %v1523, %v1522
        %v1534 = vpack.c.b16 %v1525, %v1524
        %v1535 = vpack.c.b16 %v1527, %v1526
        %1544 = vmatpush.bf16.msra.mxu0 %v1535
        %1545 = vmatpush.bf16.msra.mxu0 %v1534
        %1546 = vmatpush.bf16.msra.mxu0 %v1533
        %1547 = vmatpush.bf16.msra.mxu0 %v1532
        %1548 = vmatpush.bf16.msra.mxu0 %v1531
        %1549 = vmatpush.bf16.msra.mxu0 %v1530
        %1550 = vmatpush.bf16.msra.mxu0 %v1529
        %1551 = vmatpush.bf16.msra.mxu0 %v1528
        %1552 = vmatmul.bf16.gmra.mxu0 %v1475
        %v1553 = vpop.f32.mrf.mxu0
        %v1554 = vadd.f32 %v1494, %v1553
        %v1555 = vpop.f32.mrf.mxu0
        %1556 = vdwg.mxu0
        %1557 = vst [vmem:[%s340] sm:$0xff] %v1554
        %p1558 = scmp.lt.s32.totalorder %s21, 1
        %s1559 = scalar_select %p1558, %s21, 1
        %s1560 = smul.addr %s1559, 8
        %s1561 = scalar_lea.vmem %s7, %s1560
        // Predicated region
        $region65: #{asl_forward.1} parent=47 // pred_check
          %p1562 = pneg %p191
        $region66: #{asl_forward.1} parent=47 // pred_check_branch
          %1564 = sbr.rel (%p1562) target = $region68
        $region67: #{asl_forward.1} parent=47 // pred_region
          _
        $region68: #{asl_forward.1} parent=47 // pred_fallthru
          _
      $region48: #{asl_forward.1} parent=5 // pred_fallthru
        _
      %p1565 = scmp.le.s32.totalorder 2, %s16
      // Predicated region
      $region69: #{asl_forward.1} parent=5 // pred_check
        %p1566 = pneg %p1565
      $region70: #{asl_forward.1} parent=5 // pred_check_branch
        %1568 = sbr.rel (%p1566) target = $region72
      $region71: #{asl_forward.1} parent=5 // pred_region
        %s1569 = ssub.s32 %s16, 2
        // Predicated region
        $region73: #{asl_forward.1} parent=71 // pred_check
          %p1570 = pneg %p197
        $region74: #{asl_forward.1} parent=71 // pred_check_branch
          %1572 = sbr.rel (%p1570) target = $region76
        $region75: #{asl_forward.1} parent=71 // pred_region
          %p1573 = scmp.lt.s32.totalorder %s22, 1
          %s1574 = scalar_select %p1573, %s22, 1
          %s1575 = smul.addr %s1574, 8
          %s1576 = scalar_lea.vmem %s7, %s1575
        $region76: #{asl_forward.1} parent=71 // pred_fallthru
          _
      $region72: #{asl_forward.1} parent=5 // pred_fallthru
        _
    $region6: #{asl_forward.1} parent=1 // loop_footer
      %s20 = sadd.s32 1, %s16
    $region7: #{asl_forward.1} parent=1 // loop_footer_branch
      %15 = sbr.rel target = $region3
    $region8: #{asl_forward.1} parent=1 // loop_exit
      _
    %1577 = vsyncpa [#allocation3], 1
    %s1578 = scalar_lea.sflag [#allocation3], 1
    %1579 = vsyncpa %s1578, 1
    %1580 = vsyncpa [#allocation5], 1
    %1581 = vsyncpa [#allocation8], 1

</llo_original>
